<compile_context>
chip_gen: v6e
topology: v6e:2x2x1
jax: 0.10.0
libtpu: 0.0.40
codegen_flags: <defaults>
</compile_context>

<pallas_src>
import functools
import math

import jax
import jax.numpy as jnp
from jax import lax
from jax.experimental import pallas as pl
from jax.experimental.pallas import tpu as pltpu

# ------------------------- config (small, deterministic) -------------------------
LV_CHS = (3, 16, 32)            # lv_chs (first entry = image channels)
SEARCH_RANGE = 2                # -> (2*2+1)^2 = 25 displacement channels
CORR_ACTIVATION = True
RESIDUAL = True
OUTPUT_LEVEL = 1
NUM_LEVELS = len(LV_CHS)
NUM_DISP = (2 * SEARCH_RANGE + 1) ** 2
EST_CHS = (128, 128, 96, 64, 32, 2)          # OpticalFlowEstimator conv widths
CTX_CHS = (128, 128, 128, 96, 64, 32, 2)     # ContextNetwork conv widths
CTX_DIL = (1, 2, 4, 8, 16, 1, 1)             # ContextNetwork dilations
LEAKY_SLOPE = 0.1
CORR_LEAKY_SLOPE = 0.01                      # F.leaky_relu_ default slope

_TM = 256                                    # M-tile rows (256x128 f32 acc = 32 vregs)
_LANE = 128                                  # lane width for padded channel dims
_OUT_LANES = 8                               # final-flow store lanes (2 real channels)


def _round_up(v, m):
    return ((v + m - 1) // m) * m


@functools.lru_cache(maxsize=1)
def _vmem_limit_bytes():
    """Generation-aware scoped-VMEM limit: ~75% of physical (96MiB v5e/v6e, 48MiB v7x)."""
    default = 48 * 1024 * 1024
    try:
        cap = int(getattr(pltpu.get_tpu_info(), "vmem_capacity_bytes", 0) or 0)
        if cap > 0:
            return max(default, min(int(cap * 0.75), 100 * 1024 * 1024))
    except Exception:
        pass
    return default


# ------------------------------- tap-conv kernel ----------------------------------
def _tapconv_kernel(x_ref, w_ref, b_ref, o_ref, *, offsets, tm, slope, m_tiled):
    """out[r,:] = act(sum_t x[r + offsets[t], :] @ w[t] + b) for the current M tile."""
    row0 = pl.multiple_of(pl.program_id(1) * tm, 8) if m_tiled else 0
    acc = None
    for t, off in enumerate(offsets):
        tap = x_ref[pl.ds(row0 + off, tm), :].astype(jnp.bfloat16)
        part = jnp.dot(tap, w_ref[t], preferred_element_type=jnp.float32)
        acc = part if acc is None else acc + part
    acc = acc + b_ref[...]
    if slope is not None:
        acc = jnp.where(acc >= 0.0, acc, acc * slope)
    o_ref[...] = acc.astype(o_ref.dtype)


def _tapconv(x_flat, w, b, offsets, m, slope, out_dtype):
    """x_flat: (N, L, Cin) bf16; w: (ntap, Cin, Coutp) bf16; b: (1, Coutp) f32."""
    n, l, cin = x_flat.shape
    ntap, _, coutp = w.shape
    tm = _TM if m >= _TM else _round_up(m, 8)
    m_pad = _round_up(m, tm)
    need = max(offsets) + m_pad
    if need > l:                       # keep every in-kernel tap read in bounds
        x_flat = jnp.pad(x_flat, ((0, 0), (0, need - l), (0, 0)))
        l = need
    mt = m_pad // tm
    flops = 2 * n * m_pad * ntap * cin * coutp
    bytes_accessed = (n * l * cin * 2 + w.size * 2
                      + n * m_pad * coutp * jnp.dtype(out_dtype).itemsize)
    kernel = functools.partial(_tapconv_kernel, offsets=tuple(offsets), tm=tm,
                               slope=slope, m_tiled=mt > 1)
    return pl.pallas_call(
        kernel,
        out_shape=jax.ShapeDtypeStruct((n, m_pad, coutp), out_dtype),
        grid=(n, mt),
        in_specs=[
            pl.BlockSpec((None, l, cin), lambda i, j: (i, 0, 0)),      # resident per batch
            pl.BlockSpec((ntap, cin, coutp), lambda i, j: (0, 0, 0)),  # resident weights
            pl.BlockSpec((1, coutp), lambda i, j: (0, 0)),
        ],
        out_specs=pl.BlockSpec((None, tm, coutp), lambda i, j: (i, j, 0)),
        compiler_params=pltpu.CompilerParams(
            dimension_semantics=("parallel", "parallel"),
            vmem_limit_bytes=_vmem_limit_bytes()),
        cost_estimate=pl.CostEstimate(flops=flops, transcendentals=0,
                                      bytes_accessed=bytes_accessed),
    )(x_flat, w, b)


# ------------------------------- conv wrappers ------------------------------------
def conv3x3(x, w, b, *, dilation=1, slope=LEAKY_SLOPE, out_dtype=jnp.bfloat16):
    """3x3 conv, stride 1, padding == dilation (NHWC), via in-kernel tap matmuls.

    Flat-row trick: pad (top d, bottom d+1, left d, right wp-wd-d), flatten rows,
    compute a 'wide' output of width wp (multiple of 8 -> aligned ky tap offsets);
    junk columns wrap into the next padded row and are sliced away afterwards."""
    n, h, wd, cin = x.shape
    assert w.shape[1] == cin
    d = dilation
    wp = _round_up(wd + 2 * d, 8)
    xp = jnp.pad(x.astype(jnp.bfloat16), ((0, 0), (d, d + 1), (d, wp - wd - d), (0, 0)))
    x_flat = xp.reshape(n, (h + 2 * d + 1) * wp, cin)
    offsets = tuple(ky * d * wp + kx * d for ky in range(3) for kx in range(3))
    m = h * wp
    out = _tapconv(x_flat, w, b, offsets, m, slope, out_dtype)
    coutp = w.shape[2]
    return out[:, :m, :].reshape(n, h, wp, coutp)[:, :, :wd, :]


def conv3x3_stride2(x, w, b, *, slope=LEAKY_SLOPE, out_dtype=jnp.bfloat16):
    """3x3 conv, stride 2, padding 1.

    Space-to-depth trick: a 3x3/stride-2 conv equals a 2x2-tap conv over the 2x2
    pixel-block rearrangement (4*Cin channels), so the kernel does 4 in-kernel tap
    matmuls and no 9x im2col tensor is ever materialized in HBM."""
    n, h, wd, cin = x.shape
    assert w.shape[1] == cin
    ho, wo = (h + 1) // 2, (wd + 1) // 2
    ws = _round_up(wo + 1, 8)
    xp = jnp.pad(x.astype(jnp.bfloat16),
                 ((0, 0), (1, 2 * ho + 1 - h), (1, 2 * ws - 1 - wd), (0, 0)))
    s2d = (xp.reshape(n, ho + 1, 2, ws, 2, cin)
             .transpose(0, 1, 3, 2, 4, 5)
             .reshape(n, (ho + 1) * ws, 4 * cin))
    cout = w.shape[2]
    w2 = jnp.zeros((4, 4 * cin, cout), w.dtype)
    for ky in range(3):
        dy, a = (0, ky) if ky < 2 else (1, 0)
        for kx in range(3):
            dx, bsub = (0, kx) if kx < 2 else (1, 0)
            blk = a * 2 + bsub
            w2 = w2.at[dy * 2 + dx, blk * cin:(blk + 1) * cin, :].set(w[ky * 3 + kx])
    offsets = (0, 1, ws, ws + 1)
    out = _tapconv(s2d, w2, b, offsets, ho * ws, slope, out_dtype)
    return out[:, :ho * ws, :].reshape(n, ho, ws, cout)[:, :, :wo, :]


# ------------------------------- cost volume --------------------------------------
def _cost_volume_kernel(x1_ref, x2_ref, ws_ref, o_ref, *, offsets, tm, inv_c, slope,
                        m_tiled):
    """corr via MXU: acc += (x1 * shifted_x2) @ one_hot[d]; lane-dense (tm,128) out."""
    row0 = pl.multiple_of(pl.program_id(1) * tm, 8) if m_tiled else 0
    x1 = x1_ref[...]
    acc = None
    for d, off in enumerate(offsets):
        sh = x2_ref[pl.ds(row0 + off, tm), :]
        prod = (x1 * sh).astype(jnp.bfloat16)
        part = jnp.dot(prod, ws_ref[d], preferred_element_type=jnp.float32)
        acc = part if acc is None else acc + part
    acc = acc * inv_c
    if slope is not None:
        acc = jnp.where(acc >= 0.0, acc, acc * slope)
    o_ref[...] = acc.astype(o_ref.dtype)


def cost_volume(x1, x2):
    """corr[n,h,w,(dy,dx)] = mean_c x1[n,h,w,c] * x2[n,h+dy-p,w+dx-p,c] (0 outside)."""
    n, h, w, c = x1.shape
    p = SEARCH_RANGE
    wr = _round_up(w + 2 * p, 8)
    m = h * wr
    tm = _TM if m >= _TM else _round_up(m, 8)
    m_pad = _round_up(m, tm)
    x1w = jnp.pad(x1.astype(jnp.bfloat16), ((0, 0), (0, 0), (0, wr - w), (0, 0)))
    x1w = x1w.reshape(n, m, c)
    if m_pad > m:
        x1w = jnp.pad(x1w, ((0, 0), (0, m_pad - m), (0, 0)))
    x2p = jnp.pad(x2.astype(jnp.bfloat16), ((0, 0), (p, p + 1), (p, wr - w - p), (0, 0)))
    l2 = (h + 2 * p + 1) * wr
    x2p = x2p.reshape(n, l2, c)
    offsets = tuple(dy * wr + dx for dy in range(2 * p + 1) for dx in range(2 * p + 1))
    need = m_pad + max(offsets)
    if need > l2:
        x2p = jnp.pad(x2p, ((0, 0), (0, need - l2), (0, 0)))
        l2 = need
    # one-hot selector: MXU performs the channel reduction and yields lane-dense output.
    sel = (jnp.arange(NUM_DISP)[:, None] == jnp.arange(_LANE)[None, :]).astype(jnp.bfloat16)
    wsel = jnp.broadcast_to(sel[:, None, :], (NUM_DISP, c, _LANE))
    slope = CORR_LEAKY_SLOPE if CORR_ACTIVATION else None
    mt = m_pad // tm
    flops = 2 * n * m_pad * NUM_DISP * c * _LANE
    bytes_accessed = n * (m_pad + l2) * c * 2 + n * m_pad * _LANE * 2
    out = pl.pallas_call(
        functools.partial(_cost_volume_kernel, offsets=offsets, tm=tm,
                          inv_c=1.0 / c, slope=slope, m_tiled=mt > 1),
        out_shape=jax.ShapeDtypeStruct((n, m_pad, _LANE), jnp.bfloat16),
        grid=(n, mt),
        in_specs=[
            pl.BlockSpec((None, tm, c), lambda i, j: (i, j, 0)),
            pl.BlockSpec((None, l2, c), lambda i, j: (i, 0, 0)),   # resident per batch
            pl.BlockSpec((NUM_DISP, c, _LANE), lambda i, j: (0, 0, 0)),
        ],
        out_specs=pl.BlockSpec((None, tm, _LANE), lambda i, j: (i, j, 0)),
        compiler_params=pltpu.CompilerParams(
            dimension_semantics=("parallel", "parallel"),
            vmem_limit_bytes=_vmem_limit_bytes()),
        cost_estimate=pl.CostEstimate(flops=flops, transcendentals=0,
                                      bytes_accessed=bytes_accessed),
    )(x1w, x2p, wsel)
    return out[:, :m, :NUM_DISP].reshape(n, h, wr, NUM_DISP)[:, :, :w, :]


# ----------------------- fused estimator / context stack --------------------------
def _fused_stack_kernel(x_hbm, w_ref, b_ref, mask_ref, o_ref,
                        xv, buf_a, buf_b, sem, *,
                        layer_offsets, r_start, tm, n_chunks, slope):
    """Run an entire conv stack (uniform max-dilation padded flat layout) in VMEM.

    Layer i reads one ping-pong buffer (or the DMA'd input for layer 0), does 9
    tap matmuls per M-chunk, applies bias + LeakyReLU, zeroes the padding-ring
    positions via the precomputed mask and writes the other buffer; the last layer
    writes only 8 f32 lanes (2 real flow channels) to the output."""
    batch = pl.program_id(0)
    cp = pltpu.make_async_copy(x_hbm.at[batch], xv, sem.at[0])
    cp.start()
    cp.wait()

    # Padding head/tail of the ping-pong buffers must read as zeros.
    head = r_start
    tail0 = r_start + n_chunks * tm
    for buf in (buf_a, buf_b):
        buf[0:head, :] = jnp.zeros((head, _LANE), buf.dtype)
        buf[tail0:buf.shape[0], :] = jnp.zeros((buf.shape[0] - tail0, _LANE), buf.dtype)

    n_layers = len(layer_offsets)
    for li, offs in enumerate(layer_offsets):
        last = li == n_layers - 1
        src = xv if li == 0 else (buf_a if li % 2 == 1 else buf_b)
        dst = buf_a if li % 2 == 0 else buf_b

        def chunk(j, offs=offs, li=li, src=src, dst=dst, last=last):
            row0 = j * tm
            acc = None
            for t, off in enumerate(offs):
                tap = src[pl.ds(off + row0, tm), :]
                part = jnp.dot(tap, w_ref[li, t], preferred_element_type=jnp.float32)
                acc = part if acc is None else acc + part
            acc = acc + b_ref[li]
            if last:
                o_ref[pl.ds(row0, tm), :] = acc[:, :_OUT_LANES].astype(o_ref.dtype)
            else:
                acc = jnp.where(acc >= 0.0, acc, acc * slope)
                acc = acc * mask_ref[pl.ds(row0, tm), :]
                dst[pl.ds(r_start + row0, tm), :] = acc.astype(dst.dtype)

        if n_chunks == 1:
            chunk(0)
        else:
            pl.loop(0, n_chunks)(chunk)


def _run_stack_fused(x, w_all, b_all, dils, *, pmax, wp, band, band_pad, tm,
                     r_start, l_alloc):
    n, h, w, c0 = x.shape
    nl = int(w_all.shape[0])
    x_pad = jnp.pad(x.astype(jnp.bfloat16),
                    ((0, 0), (pmax, pmax), (pmax, wp - w - pmax), (0, _LANE - c0)))
    x_flat = x_pad.reshape(n, (h + 2 * pmax) * wp, _LANE)
    x_flat = jnp.pad(x_flat, ((0, 0), (0, l_alloc - x_flat.shape[1]), (0, 0)))
    idx = jnp.arange(band_pad, dtype=jnp.int32) + r_start
    yp, xp = idx // wp, idx % wp
    mask = ((yp >= pmax) & (yp < pmax + h) & (xp >= pmax) & (xp < pmax + w))
    mask = mask.astype(jnp.float32).reshape(band_pad, 1)
    layer_offsets = tuple(
        tuple(r_start + dy * int(d) * wp + dx * int(d)
              for dy in (-1, 0, 1) for dx in (-1, 0, 1))
        for d in dils)
    n_chunks = band_pad // tm
    flops = 2 * n * band_pad * nl * 9 * _LANE * _LANE
    bytes_accessed = (n * l_alloc * _LANE * 2 + nl * 9 * _LANE * _LANE * 2
                      + n * band_pad * _OUT_LANES * 4)
    out = pl.pallas_call(
        functools.partial(_fused_stack_kernel, layer_offsets=layer_offsets,
                          r_start=r_start, tm=tm, n_chunks=n_chunks,
                          slope=LEAKY_SLOPE),
        out_shape=jax.ShapeDtypeStruct((n, band_pad, _OUT_LANES), jnp.float32),
        grid=(n,),
        in_specs=[
            pl.BlockSpec(memory_space=pl.ANY),                        # manual DMA (1x VMEM)
            pl.BlockSpec((nl, 9, _LANE, _LANE), lambda i: (0, 0, 0, 0)),
            pl.BlockSpec((nl, 1, _LANE), lambda i: (0, 0, 0)),
            pl.BlockSpec((band_pad, 1), lambda i: (0, 0)),
        ],
        out_specs=pl.BlockSpec((None, band_pad, _OUT_LANES), lambda i: (i, 0, 0)),
        scratch_shapes=[
            pltpu.VMEM((l_alloc, _LANE), jnp.bfloat16),   # DMA'd input
            pltpu.VMEM((l_alloc, _LANE), jnp.bfloat16),   # ping
            pltpu.VMEM((l_alloc, _LANE), jnp.bfloat16),   # pong
            pltpu.SemaphoreType.DMA((1,)),
        ],
        compiler_params=pltpu.CompilerParams(
            dimension_semantics=("parallel",),
            vmem_limit_bytes=_vmem_limit_bytes()),
        cost_estimate=pl.CostEstimate(flops=flops, transcendentals=0,
                                      bytes_accessed=bytes_accessed),
    )(x_flat, w_all, b_all, mask)
    return out[:, :band, :2].reshape(n, h, wp, 2)[:, :, :w, :]


def _run_stack_unfused(x, w_all, b_all, dils):
    """Fallback: per-layer conv3x3 chain (used when resident fusion would not fit VMEM)."""
    nl = int(w_all.shape[0])
    y = jnp.pad(x, ((0, 0), (0, 0), (0, 0), (0, _LANE - x.shape[-1]))).astype(jnp.bfloat16)
    for li in range(nl - 1):
        y = conv3x3(y, w_all[li], b_all[li], dilation=int(dils[li]))
    w_last = w_all[nl - 1][:, :, :_OUT_LANES]          # narrow final store (8 lanes)
    b_last = b_all[nl - 1][:, :_OUT_LANES]
    out = conv3x3(y, w_last, b_last, dilation=int(dils[-1]), slope=None,
                  out_dtype=jnp.float32)
    return out[..., :2]


def run_stack(stack, x, dils, *, force_unfused=False):
    """Run one OpticalFlowEstimator / ContextNetwork stack; returns (n,h,w,2) f32."""
    w_all, b_all = stack
    n, h, w, c0 = x.shape
    assert c0 <= _LANE and len(dils) == int(w_all.shape[0])
    nl = int(w_all.shape[0])
    pmax = int(max(dils))
    wp = _round_up(w + 2 * pmax, 8)
    band = h * wp
    tm = _TM if band >= _TM else _round_up(band, 8)
    band_pad = _round_up(band, tm)
    r_start = pmax * wp + pmax
    l_alloc = _round_up(r_start + band_pad + pmax * wp + pmax, 8)
    est_bytes = (3 * l_alloc * _LANE * 2                       # input + 2 ping-pong buffers
                 + 2 * nl * 9 * _LANE * _LANE * 2              # double-buffered weights
                 + 2 * band_pad * (_OUT_LANES * 4 + 4)
                 + (8 << 20))
    if force_unfused or est_bytes > int(0.9 * _vmem_limit_bytes()):
        # TODO(synk): an M-tiled-with-halo fused variant would keep fusion at very
        #             large resolutions; here we fall back to per-layer convs.
        return _run_stack_unfused(x, w_all, b_all, dils)
    return _run_stack_fused(x, w_all, b_all, dils, pmax=pmax, wp=wp, band=band,
                            band_pad=band_pad, tm=tm, r_start=r_start, l_alloc=l_alloc)


# --------------------- warping & bilinear resize (plain JAX glue) -----------------
# TODO(synk): grid_sample-style bilinear warping / align_corners resize are
#             data-dependent gathers; they stay in plain JAX (XLA) rather than Pallas.
def warp(x, flow):
    """Bilinear warp (F.grid_sample-style, zeros padding). flow = (dx, dy) in pixels."""
    n, h, w, c = x.shape
    ys, xs = jnp.meshgrid(jnp.arange(h, dtype=jnp.float32),
                          jnp.arange(w, dtype=jnp.float32), indexing="ij")
    sx = xs[None] + flow[..., 0]
    sy = ys[None] + flow[..., 1]
    x0 = jnp.floor(sx)
    y0 = jnp.floor(sy)
    x1 = x0 + 1.0
    y1 = y0 + 1.0
    wx1 = sx - x0
    wx0 = 1.0 - wx1
    wy1 = sy - y0
    wy0 = 1.0 - wy1
    xf = x.reshape(n, h * w, c)

    def gather(xi, yi):
        valid = (xi >= 0) & (xi <= w - 1) & (yi >= 0) & (yi <= h - 1)
        xi_c = jnp.clip(xi, 0, w - 1).astype(jnp.int32)
        yi_c = jnp.clip(yi, 0, h - 1).astype(jnp.int32)
        flat = (yi_c * w + xi_c).reshape(n, h * w, 1)
        vals = jnp.take_along_axis(xf, flat, axis=1).reshape(n, h, w, c)
        return jnp.where(valid[..., None], vals.astype(jnp.float32), 0.0)

    out = (gather(x0, y0) * (wx0 * wy0)[..., None]
           + gather(x1, y0) * (wx1 * wy0)[..., None]
           + gather(x0, y1) * (wx0 * wy1)[..., None]
           + gather(x1, y1) * (wx1 * wy1)[..., None])
    return out.astype(x.dtype)


def resize_bilinear_align(x, ho, wo):
    """F.interpolate(mode='bilinear', align_corners=True)."""
    n, h, w, c = x.shape

    def coords(out_size, in_size):
        if out_size == 1 or in_size == 1:
            return jnp.zeros((out_size,), jnp.float32)
        return jnp.arange(out_size, dtype=jnp.float32) * ((in_size - 1) / (out_size - 1))

    yc = coords(ho, h)
    xc = coords(wo, w)
    y0 = jnp.floor(yc).astype(jnp.int32)
    y1 = jnp.minimum(y0 + 1, h - 1)
    x0 = jnp.floor(xc).astype(jnp.int32)
    x1 = jnp.minimum(x0 + 1, w - 1)
    wy = (yc - y0.astype(jnp.float32))[None, :, None, None]
    wx = (xc - x0.astype(jnp.float32))[None, None, :, None]

    def g(yi, xi):
        return x[:, yi][:, :, xi]

    return (g(y0, x0) * (1 - wy) * (1 - wx) + g(y0, x1) * (1 - wy) * wx
            + g(y1, x0) * wy * (1 - wx) + g(y1, x1) * wy * wx)


# ------------------------------- parameter init -----------------------------------
def _make_conv_raw(key, cin, cout):
    """xavier-uniform 3x3 weights (9,cin,cout) bf16, uniform[0,1) bias (1,cout) f32."""
    kw, kb = jax.random.split(key)
    limit = math.sqrt(6.0 / (9 * cin + 9 * cout))
    w = jax.random.uniform(kw, (9, cin, cout), jnp.float32, -limit, limit)
    b = jax.random.uniform(kb, (1, cout), jnp.float32, 0.0, 1.0)
    return w.astype(jnp.bfloat16), b


def _make_stack(keys, cin0, widths):
    """Stacked 3x3-conv weights embedded into zero-padded 128-lane slots."""
    assert cin0 <= _LANE and max(widths) <= _LANE
    nl = len(widths)
    w_all = jnp.zeros((nl, 9, _LANE, _LANE), jnp.float32)
    b_all = jnp.zeros((nl, 1, _LANE), jnp.float32)
    prev = cin0
    for li, c in enumerate(widths):
        kw, kb = jax.random.split(next(keys))
        limit = math.sqrt(6.0 / (9 * prev + 9 * c))
        wl = jax.random.uniform(kw, (9, prev, c), jnp.float32, -limit, limit)
        bl = jax.random.uniform(kb, (1, c), jnp.float32, 0.0, 1.0)
        w_all = w_all.at[li, :, :prev, :c].set(wl)
        b_all = b_all.at[li, :, :c].set(bl)
        prev = c
    return w_all.astype(jnp.bfloat16), b_all


def init_params(key):
    keys = iter(jax.random.split(key, 128))
    pyramid = []
    for cin, cout in zip(LV_CHS[:-1], LV_CHS[1:]):
        pyramid.append((_make_conv_raw(next(keys), cin, cout),      # stride-2 conv
                        _make_conv_raw(next(keys), cout, cout)))    # stride-1 conv
    est, ctx = [], []
    for ch in LV_CHS[::-1]:
        est.append(_make_stack(keys, ch + 2 * NUM_DISP + 2, EST_CHS))
        ctx.append(_make_stack(keys, ch + 2, CTX_CHS))
    return {"pyramid": pyramid, "est": est, "ctx": ctx}


# ------------------------------- sub-networks -------------------------------------
def feature_pyramid(pyr_params, x):
    feats = []
    for (wa, ba), (wb, bb) in pyr_params:
        x = conv3x3_stride2(x, wa, ba)
        x = conv3x3(x, wb, bb)
        feats.append(x)
    return feats[::-1]


# ------------------------------- full forward -------------------------------------
@jax.jit
def pwc_semi_forward(params, x1_raw_nchw, x2_raw_nchw):
    x1_raw = jnp.transpose(x1_raw_nchw, (0, 2, 3, 1)).astype(jnp.bfloat16)  # NCHW->NHWC
    x2_raw = jnp.transpose(x2_raw_nchw, (0, 2, 3, 1)).astype(jnp.bfloat16)
    x1_pyr = feature_pyramid(params["pyramid"], x1_raw) + [x1_raw]
    x2_pyr = feature_pyramid(params["pyramid"], x2_raw) + [x2_raw]

    est_dils = (1,) * len(EST_CHS)
    flow_f = flow_b = None
    for l, (x1, x2) in enumerate(zip(x1_pyr, x2_pyr)):
        n, h, w, _ = x1.shape
        if l == 0:
            flow_f = jnp.zeros((n, h, w, 2), jnp.float32)
            flow_b = jnp.zeros((n, h, w, 2), jnp.float32)
        else:
            flow_f = resize_bilinear_align(flow_f, h, w) * 2.0
            flow_b = resize_bilinear_align(flow_b, h, w) * 2.0

        x2_semiwarp = warp(x2, flow_f * 0.5)
        x1_semiwarp = warp(x1, flow_b * 0.5)
        x2_warp = warp(x2, flow_f)
        x1_warp = warp(x1, flow_b)

        corr = cost_volume(x1_semiwarp, x2_semiwarp)       # corr leaky-relu fused in-kernel
        corr_f = cost_volume(x1, x2_warp)
        corr_b = cost_volume(x1_warp, x2)

        flow_f_bf = flow_f.astype(jnp.bfloat16)
        flow_b_bf = flow_b.astype(jnp.bfloat16)
        in_f = jnp.concatenate([x1, corr_f, corr, flow_f_bf], axis=-1)
        in_b = jnp.concatenate([x2, corr_b, corr, flow_b_bf], axis=-1)
        flow_f_coarse = run_stack(params["est"][l], in_f, est_dils)
        flow_b_coarse = run_stack(params["est"][l], in_b, est_dils)
        if RESIDUAL:
            flow_f_coarse = flow_f_coarse + flow_f
            flow_b_coarse = flow_b_coarse + flow_b

        flow_f_fine = run_stack(params["ctx"][l],
                                jnp.concatenate([x1, flow_f_bf], axis=-1), CTX_DIL)
        flow_b_fine = run_stack(params["ctx"][l],
                                jnp.concatenate([x2, flow_b_bf], axis=-1), CTX_DIL)
        flow_f = flow_f_coarse + flow_f_fine
        flow_b = flow_b_coarse + flow_b_fine

        if l == OUTPUT_LEVEL:
            scale = 2 ** (NUM_LEVELS - OUTPUT_LEVEL - 1)
            flow_f = resize_bilinear_align(flow_f, h * scale, w * scale) * float(scale)
            break

    return jnp.transpose(flow_f, (0, 3, 1, 2))                 # NHWC -> NCHW


# --------------------------- pure-JAX references (self-check) ----------------------
def _ref_conv3x3(x, w9, b, *, stride=1, dilation=1, slope=LEAKY_SLOPE):
    w_hwio = w9.astype(jnp.float32).reshape(3, 3, w9.shape[1], w9.shape[2])
    y = lax.conv_general_dilated(
        x.astype(jnp.float32), w_hwio, window_strides=(stride, stride),
        padding=[(dilation, dilation), (dilation, dilation)],
        rhs_dilation=(dilation, dilation),
        dimension_numbers=("NHWC", "HWIO", "NHWC"))
    y = y + b.astype(jnp.float32).reshape(1, 1, 1, -1)
    if slope is not None:
        y = jnp.where(y >= 0.0, y, y * slope)
    return y


def _ref_cost_volume(x1, x2):
    p = SEARCH_RANGE
    n, h, w, c = x1.shape
    x2p = jnp.pad(x2.astype(jnp.float32), ((0, 0), (p, p), (p, p), (0, 0)))
    cols = []
    for dy in range(2 * p + 1):
        for dx in range(2 * p + 1):
            sh = x2p[:, dy:dy + h, dx:dx + w, :]
            cols.append(jnp.mean(x1.astype(jnp.float32) * sh, axis=-1))
    out = jnp.stack(cols, axis=-1)
    if CORR_ACTIVATION:
        out = jnp.where(out >= 0.0, out, out * CORR_LEAKY_SLOPE)
    return out


def _ref_stack(x, w_all, b_all, dils):
    nl = int(w_all.shape[0])
    y = jnp.pad(x, ((0, 0), (0, 0), (0, 0), (0, _LANE - x.shape[-1]))).astype(jnp.bfloat16)
    for li in range(nl):
        last = li == nl - 1
        z = _ref_conv3x3(y, w_all[li], b_all[li], dilation=int(dils[li]),
                         slope=None if last else LEAKY_SLOPE)
        y = z if last else z.astype(jnp.bfloat16)
    return y[..., :2]


def _self_check(key):
    tol = 0.1
    ks = jax.random.split(key, 8)
    # stride-1 conv, dilations 1 and 2 (odd widths exercise alignment padding)
    x = jax.random.normal(ks[0], (2, 6, 11, 12), jnp.float32).astype(jnp.bfloat16)
    w, b = _make_conv_raw(ks[1], 12, 24)
    for d in (1, 2):
        got = conv3x3(x, w, b, dilation=d, out_dtype=jnp.float32)
        ref = _ref_conv3x3(x, w, b, dilation=d)
        assert float(jnp.max(jnp.abs(got - ref))) < tol, ("conv3x3", d)
    # stride-2 conv with odd spatial dims
    x2 = jax.random.normal(ks[2], (2, 7, 9, 5), jnp.float32).astype(jnp.bfloat16)
    w2, b2 = _make_conv_raw(ks[3], 5, 16)
    got = conv3x3_stride2(x2, w2, b2, out_dtype=jnp.float32)
    ref = _ref_conv3x3(x2, w2, b2, stride=2)
    assert float(jnp.max(jnp.abs(got - ref))) < tol, "conv3x3_stride2"
    # cost volume
    a = jax.random.normal(ks[4], (2, 6, 10, 16), jnp.float32).astype(jnp.bfloat16)
    bb = jax.random.normal(ks[5], (2, 6, 10, 16), jnp.float32).astype(jnp.bfloat16)
    got = cost_volume(a, bb).astype(jnp.float32)
    ref = _ref_cost_volume(a, bb)
    assert float(jnp.max(jnp.abs(got - ref))) < tol, "cost_volume"
    # fused and unfused conv stacks (mixed dilations)
    xin = jax.random.normal(ks[6], (1, 5, 7, 20), jnp.float32).astype(jnp.bfloat16)
    kit = iter(jax.random.split(ks[7], 16))
    w_all, b_all = _make_stack(kit, 20, (32, 24, 2))
    dils = (1, 2, 1)
    ref = _ref_stack(xin, w_all, b_all, dils)
    got_f = run_stack((w_all, b_all), xin, dils)
    got_u = run_stack((w_all, b_all), xin, dils, force_unfused=True)
    assert float(jnp.max(jnp.abs(got_f - ref))) < tol, "fused stack"
    assert float(jnp.max(jnp.abs(got_u - ref))) < tol, "unfused stack"


# ------------------------------------ main -----------------------------------------
if __name__ == "__main__":
    key = jax.random.PRNGKey(0)
    kc, kp, k1, k2 = jax.random.split(key, 4)

    _self_check(kc)      # building-block kernels vs pure-JAX references

    params = init_params(kp)
    x1_raw = jax.random.normal(k1, (2, 3, 16, 16), jnp.float32)
    x2_raw = jax.random.normal(k2, (2, 3, 16, 16), jnp.float32)
    flow = pwc_semi_forward(params, x1_raw, x2_raw)
    jax.block_until_ready(flow)
    assert flow.shape == (2, 2, 16, 16), flow.shape
    assert bool(jnp.all(jnp.isfinite(flow)))
    print("KERNEL_OK")
</pallas_src>

<mosaic_0001>
module attributes {stable_mosaic.version = 11 : i64} {
  func.func @_tapconv_kernel(%arg0: i32, %arg1: i32, %arg2: memref<1x144x12xbf16, #tpu.memory_space<vmem>>, %arg3: memref<9x12x24xbf16, #tpu.memory_space<vmem>>, %arg4: memref<1x24xf32, #tpu.memory_space<vmem>>, %arg5: memref<1x96x24xf32, #tpu.memory_space<vmem>>) attributes {dimension_semantics = [#tpu.dimension_semantics<parallel>, #tpu.dimension_semantics<parallel>], iteration_bounds = array<i64: 2, 1>, scalar_prefetch = 0 : i64, scratch_operands = 0 : i64, tpu.core_type = #tpu.core_type<tc>, window_params = [{transform_indices = @transform_0, window_bounds = array<i64: 1, 144, 12>}, {pipeline_mode = #tpu.pipeline_mode<synchronous>, transform_indices = @transform_1, window_bounds = array<i64: 9, 12, 24>}, {pipeline_mode = #tpu.pipeline_mode<synchronous>, transform_indices = @transform_2, window_bounds = array<i64: 1, 24>}, {transform_indices = @transform_3, window_bounds = array<i64: 1, 96, 24>}]} {
    %c0 = arith.constant 0 : index
    %c0_0 = arith.constant 0 : index
    %c0_1 = arith.constant 0 : index
    %0 = vector.load %arg2[%c0, %c0_0, %c0_1] : memref<1x144x12xbf16, #tpu.memory_space<vmem>>, vector<1x96x12xbf16>
    %1 = vector.shape_cast %0 : vector<1x96x12xbf16> to vector<96x12xbf16>
    %c0_2 = arith.constant 0 : index
    %c0_3 = arith.constant 0 : index
    %c0_4 = arith.constant 0 : index
    %2 = vector.load %arg3[%c0_2, %c0_3, %c0_4] : memref<9x12x24xbf16, #tpu.memory_space<vmem>>, vector<1x12x24xbf16>
    %3 = vector.shape_cast %2 : vector<1x12x24xbf16> to vector<12x24xbf16>
    %cst = arith.constant dense<0.000000e+00> : vector<96x24xf32>
    %4 = tpu.matmul %1, %3, %cst {dimension_numbers = #tpu.dot_dimension_numbers<[1], [0], [0], [1], [0, 0, 1, 1], [], []>} : vector<96x12xbf16>, vector<12x24xbf16>, vector<96x24xf32> -> vector<96x24xf32>
    %c0_5 = arith.constant 0 : index
    %c1 = arith.constant 1 : index
    %c0_6 = arith.constant 0 : index
    %5 = vector.load %arg2[%c0_5, %c1, %c0_6] : memref<1x144x12xbf16, #tpu.memory_space<vmem>>, vector<1x96x12xbf16>
    %6 = vector.shape_cast %5 : vector<1x96x12xbf16> to vector<96x12xbf16>
    %c1_7 = arith.constant 1 : index
    %c0_8 = arith.constant 0 : index
    %c0_9 = arith.constant 0 : index
    %7 = vector.load %arg3[%c1_7, %c0_8, %c0_9] : memref<9x12x24xbf16, #tpu.memory_space<vmem>>, vector<1x12x24xbf16>
    %8 = vector.shape_cast %7 : vector<1x12x24xbf16> to vector<12x24xbf16>
    %cst_10 = arith.constant dense<0.000000e+00> : vector<96x24xf32>
    %9 = tpu.matmul %6, %8, %cst_10 {dimension_numbers = #tpu.dot_dimension_numbers<[1], [0], [0], [1], [0, 0, 1, 1], [], []>} : vector<96x12xbf16>, vector<12x24xbf16>, vector<96x24xf32> -> vector<96x24xf32>
    %10 = arith.addf %4, %9 : vector<96x24xf32>
    %c0_11 = arith.constant 0 : index
    %c2 = arith.constant 2 : index
    %c0_12 = arith.constant 0 : index
    %11 = vector.load %arg2[%c0_11, %c2, %c0_12] : memref<1x144x12xbf16, #tpu.memory_space<vmem>>, vector<1x96x12xbf16>
    %12 = vector.shape_cast %11 : vector<1x96x12xbf16> to vector<96x12xbf16>
    %c2_13 = arith.constant 2 : index
    %c0_14 = arith.constant 0 : index
    %c0_15 = arith.constant 0 : index
    %13 = vector.load %arg3[%c2_13, %c0_14, %c0_15] : memref<9x12x24xbf16, #tpu.memory_space<vmem>>, vector<1x12x24xbf16>
    %14 = vector.shape_cast %13 : vector<1x12x24xbf16> to vector<12x24xbf16>
    %cst_16 = arith.constant dense<0.000000e+00> : vector<96x24xf32>
    %15 = tpu.matmul %12, %14, %cst_16 {dimension_numbers = #tpu.dot_dimension_numbers<[1], [0], [0], [1], [0, 0, 1, 1], [], []>} : vector<96x12xbf16>, vector<12x24xbf16>, vector<96x24xf32> -> vector<96x24xf32>
    %16 = arith.addf %10, %15 : vector<96x24xf32>
    %c0_17 = arith.constant 0 : index
    %c16 = arith.constant 16 : index
    %c0_18 = arith.constant 0 : index
    %17 = vector.load %arg2[%c0_17, %c16, %c0_18] : memref<1x144x12xbf16, #tpu.memory_space<vmem>>, vector<1x96x12xbf16>
    %18 = vector.shape_cast %17 : vector<1x96x12xbf16> to vector<96x12xbf16>
    %c3 = arith.constant 3 : index
    %c0_19 = arith.constant 0 : index
    %c0_20 = arith.constant 0 : index
    %19 = vector.load %arg3[%c3, %c0_19, %c0_20] : memref<9x12x24xbf16, #tpu.memory_space<vmem>>, vector<1x12x24xbf16>
    %20 = vector.shape_cast %19 : vector<1x12x24xbf16> to vector<12x24xbf16>
    %cst_21 = arith.constant dense<0.000000e+00> : vector<96x24xf32>
    %21 = tpu.matmul %18, %20, %cst_21 {dimension_numbers = #tpu.dot_dimension_numbers<[1], [0], [0], [1], [0, 0, 1, 1], [], []>} : vector<96x12xbf16>, vector<12x24xbf16>, vector<96x24xf32> -> vector<96x24xf32>
    %22 = arith.addf %16, %21 : vector<96x24xf32>
    %c0_22 = arith.constant 0 : index
    %c17 = arith.constant 17 : index
    %c0_23 = arith.constant 0 : index
    %23 = vector.load %arg2[%c0_22, %c17, %c0_23] : memref<1x144x12xbf16, #tpu.memory_space<vmem>>, vector<1x96x12xbf16>
    %24 = vector.shape_cast %23 : vector<1x96x12xbf16> to vector<96x12xbf16>
    %c4 = arith.constant 4 : index
    %c0_24 = arith.constant 0 : index
    %c0_25 = arith.constant 0 : index
    %25 = vector.load %arg3[%c4, %c0_24, %c0_25] : memref<9x12x24xbf16, #tpu.memory_space<vmem>>, vector<1x12x24xbf16>
    %26 = vector.shape_cast %25 : vector<1x12x24xbf16> to vector<12x24xbf16>
    %cst_26 = arith.constant dense<0.000000e+00> : vector<96x24xf32>
    %27 = tpu.matmul %24, %26, %cst_26 {dimension_numbers = #tpu.dot_dimension_numbers<[1], [0], [0], [1], [0, 0, 1, 1], [], []>} : vector<96x12xbf16>, vector<12x24xbf16>, vector<96x24xf32> -> vector<96x24xf32>
    %28 = arith.addf %22, %27 : vector<96x24xf32>
    %c0_27 = arith.constant 0 : index
    %c18 = arith.constant 18 : index
    %c0_28 = arith.constant 0 : index
    %29 = vector.load %arg2[%c0_27, %c18, %c0_28] : memref<1x144x12xbf16, #tpu.memory_space<vmem>>, vector<1x96x12xbf16>
    %30 = vector.shape_cast %29 : vector<1x96x12xbf16> to vector<96x12xbf16>
    %c5 = arith.constant 5 : index
    %c0_29 = arith.constant 0 : index
    %c0_30 = arith.constant 0 : index
    %31 = vector.load %arg3[%c5, %c0_29, %c0_30] : memref<9x12x24xbf16, #tpu.memory_space<vmem>>, vector<1x12x24xbf16>
    %32 = vector.shape_cast %31 : vector<1x12x24xbf16> to vector<12x24xbf16>
    %cst_31 = arith.constant dense<0.000000e+00> : vector<96x24xf32>
    %33 = tpu.matmul %30, %32, %cst_31 {dimension_numbers = #tpu.dot_dimension_numbers<[1], [0], [0], [1], [0, 0, 1, 1], [], []>} : vector<96x12xbf16>, vector<12x24xbf16>, vector<96x24xf32> -> vector<96x24xf32>
    %34 = arith.addf %28, %33 : vector<96x24xf32>
    %c0_32 = arith.constant 0 : index
    %c32 = arith.constant 32 : index
    %c0_33 = arith.constant 0 : index
    %35 = vector.load %arg2[%c0_32, %c32, %c0_33] : memref<1x144x12xbf16, #tpu.memory_space<vmem>>, vector<1x96x12xbf16>
    %36 = vector.shape_cast %35 : vector<1x96x12xbf16> to vector<96x12xbf16>
    %c6 = arith.constant 6 : index
    %c0_34 = arith.constant 0 : index
    %c0_35 = arith.constant 0 : index
    %37 = vector.load %arg3[%c6, %c0_34, %c0_35] : memref<9x12x24xbf16, #tpu.memory_space<vmem>>, vector<1x12x24xbf16>
    %38 = vector.shape_cast %37 : vector<1x12x24xbf16> to vector<12x24xbf16>
    %cst_36 = arith.constant dense<0.000000e+00> : vector<96x24xf32>
    %39 = tpu.matmul %36, %38, %cst_36 {dimension_numbers = #tpu.dot_dimension_numbers<[1], [0], [0], [1], [0, 0, 1, 1], [], []>} : vector<96x12xbf16>, vector<12x24xbf16>, vector<96x24xf32> -> vector<96x24xf32>
    %40 = arith.addf %34, %39 : vector<96x24xf32>
    %c0_37 = arith.constant 0 : index
    %c33 = arith.constant 33 : index
    %c0_38 = arith.constant 0 : index
    %41 = vector.load %arg2[%c0_37, %c33, %c0_38] : memref<1x144x12xbf16, #tpu.memory_space<vmem>>, vector<1x96x12xbf16>
    %42 = vector.shape_cast %41 : vector<1x96x12xbf16> to vector<96x12xbf16>
    %c7 = arith.constant 7 : index
    %c0_39 = arith.constant 0 : index
    %c0_40 = arith.constant 0 : index
    %43 = vector.load %arg3[%c7, %c0_39, %c0_40] : memref<9x12x24xbf16, #tpu.memory_space<vmem>>, vector<1x12x24xbf16>
    %44 = vector.shape_cast %43 : vector<1x12x24xbf16> to vector<12x24xbf16>
    %cst_41 = arith.constant dense<0.000000e+00> : vector<96x24xf32>
    %45 = tpu.matmul %42, %44, %cst_41 {dimension_numbers = #tpu.dot_dimension_numbers<[1], [0], [0], [1], [0, 0, 1, 1], [], []>} : vector<96x12xbf16>, vector<12x24xbf16>, vector<96x24xf32> -> vector<96x24xf32>
    %46 = arith.addf %40, %45 : vector<96x24xf32>
    %c0_42 = arith.constant 0 : index
    %c34 = arith.constant 34 : index
    %c0_43 = arith.constant 0 : index
    %47 = vector.load %arg2[%c0_42, %c34, %c0_43] : memref<1x144x12xbf16, #tpu.memory_space<vmem>>, vector<1x96x12xbf16>
    %48 = vector.shape_cast %47 : vector<1x96x12xbf16> to vector<96x12xbf16>
    %c8 = arith.constant 8 : index
    %c0_44 = arith.constant 0 : index
    %c0_45 = arith.constant 0 : index
    %49 = vector.load %arg3[%c8, %c0_44, %c0_45] : memref<9x12x24xbf16, #tpu.memory_space<vmem>>, vector<1x12x24xbf16>
    %50 = vector.shape_cast %49 : vector<1x12x24xbf16> to vector<12x24xbf16>
    %cst_46 = arith.constant dense<0.000000e+00> : vector<96x24xf32>
    %51 = tpu.matmul %48, %50, %cst_46 {dimension_numbers = #tpu.dot_dimension_numbers<[1], [0], [0], [1], [0, 0, 1, 1], [], []>} : vector<96x12xbf16>, vector<12x24xbf16>, vector<96x24xf32> -> vector<96x24xf32>
    %52 = arith.addf %46, %51 : vector<96x24xf32>
    %c0_47 = arith.constant 0 : index
    %c0_48 = arith.constant 0 : index
    %53 = vector.load %arg4[%c0_47, %c0_48] : memref<1x24xf32, #tpu.memory_space<vmem>>, vector<1x24xf32>
    %54 = vector.broadcast %53 : vector<1x24xf32> to vector<96x24xf32>
    %55 = arith.addf %52, %54 : vector<96x24xf32>
    %cst_49 = arith.constant 0.000000e+00 : f32
    %56 = vector.broadcast %cst_49 : f32 to vector<96x24xf32>
    %57 = arith.cmpf oge, %55, %56 : vector<96x24xf32>
    %cst_50 = arith.constant 1.000000e-01 : f32
    %58 = vector.broadcast %cst_50 : f32 to vector<96x24xf32>
    %59 = arith.mulf %55, %58 : vector<96x24xf32>
    %60 = arith.select %57, %55, %59 : vector<96x24xi1>, vector<96x24xf32>
    %c0_51 = arith.constant 0 : index
    %c0_52 = arith.constant 0 : index
    %c0_53 = arith.constant 0 : index
    %61 = vector.load %arg5[%c0_51, %c0_52, %c0_53] : memref<1x96x24xf32, #tpu.memory_space<vmem>>, vector<1x96x24xf32>
    %62 = vector.shape_cast %61 : vector<1x96x24xf32> to vector<96x24xf32>
    %63 = vector.shape_cast %60 : vector<96x24xf32> to vector<1x96x24xf32>
    tpu.vector_store %arg5[%c0_51, %c0_52, %c0_53], %63 {strides = array<i32>} : memref<1x96x24xf32, #tpu.memory_space<vmem>>, vector<1x96x24xf32>,
    return
  }
  func.func @transform_0(%arg0: i32, %arg1: i32) -> (i32, i32, i32) {
    %c0_i32 = arith.constant 0 : i32
    %c0_i32_0 = arith.constant 0 : i32
    %c0_i32_1 = arith.constant 0 : i32
    return %arg0, %c0_i32, %c0_i32_0 : i32, i32, i32
  }
  func.func @transform_1(%arg0: i32, %arg1: i32) -> (i32, i32, i32) {
    %c0_i32 = arith.constant 0 : i32
    %c0_i32_0 = arith.constant 0 : i32
    %c0_i32_1 = arith.constant 0 : i32
    %c0_i32_2 = arith.constant 0 : i32
    return %c0_i32, %c0_i32_0, %c0_i32_1 : i32, i32, i32
  }
  func.func @transform_2(%arg0: i32, %arg1: i32) -> (i32, i32) {
    %c0_i32 = arith.constant 0 : i32
    %c0_i32_0 = arith.constant 0 : i32
    %c0_i32_1 = arith.constant 0 : i32
    return %c0_i32, %c0_i32_0 : i32, i32
  }
  func.func @transform_3(%arg0: i32, %arg1: i32) -> (i32, i32, i32) {
    %c0_i32 = arith.constant 0 : i32
    %c0_i32_0 = arith.constant 0 : i32
    return %arg0, %arg1, %c0_i32 : i32, i32, i32
  }
}

</mosaic_0001>

<llo_original>
// kernel: tpu_custom_call.1
$region0: #{tpu_custom_call.1}
  #allocation0 [shape = 'u32[]', space=smem, size = 0x4, offset = 0x4, fixed_abs, tag = 'smem constant byte address 0x4 - core index']
  #allocation1 [shape = 'u32[144,128]{1,0:T(1,128)}', space=vmem, size = 0x12000, scoped, tag = 'internal scratch']
  %s0 = inlined_call_operand.vmem [shape: bf16[2,144,12], index: 0, kind: input, shape index: {}]
  %s1 = inlined_call_operand.vmem [shape: bf16[9,12,24], index: 1, kind: input, shape index: {}]
  %s2 = inlined_call_operand.vmem [shape: f32[1,24], index: 2, kind: input, shape index: {}]
  %s3 = inlined_call_operand.vmem [shape: f32[2,96,24], index: 3, kind: output, shape index: {}]
  %s4 = sld [smem:[#allocation0]]
  $region45: #{tpu_custom_call.1} parent=0
    _
  %s6 = ssub.s32 1, %s4
  %s7 = scalar_select 0, %s6, %s4
  loop: start=0, step=1, limit=4
  $region2: #{tpu_custom_call.1} parent=0 // loop_pre_header
    _
  $region3: #{tpu_custom_call.1} parent=0 // loop_header
    %s9 = sphi 0, %s13
    %p10 = scmp.ge.s32.totalorder %s9, 4
    %s16 = sphi 0, %s28
    %s17 = sphi 0, %s24
    %s18 = sphi 0, %s16
    %s19 = sphi 0, %s17
    %s20 = sphi 0, %s18
    %s21 = sphi 0, %s19
    %s31 = sphi 0, %s33
    %s34 = sphi 0, %s31
    %s35 = sphi 0, %s34
    %s51 = sphi 0, %s35
    %s55 = sphi 0, %s55
    %s57 = sphi 0, %s55
    %s58 = sphi 0, %s57
    %s72 = sphi 0, %s58
    %s76 = sphi 0, %s76
    %s78 = sphi 0, %s76
    %s79 = sphi 0, %s78
    %s93 = sphi 0, %s79
    %s101 = sphi 0, %s103
    %s104 = sphi 0, %s101
    %s105 = sphi 0, %s104
    %s121 = sphi 0, %s105
  $region4: #{tpu_custom_call.1} parent=0 // loop_header_branch
    %12 = sbr.rel (%p10) target = $region8
  $region5: #{tpu_custom_call.1} parent=0 // loop_body
    %s14 = ssub.s32 %s9, 1
    %s15 = ssub.s32 %s9, 2
    %s22 = sadd.s32 1, %s17
    %p23 = scmp.ge.s32.totalorder %s22, 1
    %s24 = scalar_select %p23, 0, %s22
    %s25 = sadd.s32 1, %s16
    %s26 = scalar_select %p23, %s25, %s16
    %p27 = scmp.ge.s32.totalorder %s26, 2
    %s28 = scalar_select %p27, 0, %s26
    %s29 = ssub.s32 %s16, %s28
    %p30 = scmp.eq.s32.totalorder %s29, 0
    %s32 = sadd.s32 %s31, 1
    %s33 = scalar_select %p30, %s31, %s32
    %p36 = pneg %p30
    %p37 = scmp.eq.s32.totalorder %s9, 1
    %p38 = por %p36, %p37
    %p39 = scmp.ne.s32.totalorder %s31, %s34
    %p40 = scmp.eq.s32.totalorder %s9, 0
    %p41 = por %p39, %p40
    %p42 = scmp.ne.s32.totalorder %s31, %s34
    %p43 = scmp.eq.s32.totalorder %s14, 1
    %p44 = por %p42, %p43
    %p45 = scmp.ne.s32.totalorder %s34, %s35
    %p46 = scmp.eq.s32.totalorder %s14, 0
    %p47 = por %p45, %p46
    %p48 = scmp.ne.s32.totalorder %s34, %s35
    %p49 = scmp.eq.s32.totalorder %s15, 1
    %p50 = por %p48, %p49
    %p52 = scmp.ne.s32.totalorder %s35, %s51
    %p53 = scmp.eq.s32.totalorder %s15, 0
    %p54 = por %p52, %p53
    %s56 = sadd.s32 %s55, 1
    %p59 = scmp.eq.s32.totalorder %s9, 1
    %p60 = scmp.ne.s32.totalorder %s55, %s57
    %p61 = scmp.eq.s32.totalorder %s9, 0
    %p62 = por %p60, %p61
    %p63 = scmp.ne.s32.totalorder %s55, %s57
    %p64 = scmp.eq.s32.totalorder %s14, 1
    %p65 = por %p63, %p64
    %p66 = scmp.ne.s32.totalorder %s57, %s58
    %p67 = scmp.eq.s32.totalorder %s14, 0
    %p68 = por %p66, %p67
    %p69 = scmp.ne.s32.totalorder %s57, %s58
    %p70 = scmp.eq.s32.totalorder %s15, 1
    %p71 = por %p69, %p70
    %p73 = scmp.ne.s32.totalorder %s58, %s72
    %p74 = scmp.eq.s32.totalorder %s15, 0
    %p75 = por %p73, %p74
    %s77 = sadd.s32 %s76, 1
    %p80 = scmp.eq.s32.totalorder %s9, 1
    %p81 = scmp.ne.s32.totalorder %s76, %s78
    %p82 = scmp.eq.s32.totalorder %s9, 0
    %p83 = por %p81, %p82
    %p84 = scmp.ne.s32.totalorder %s76, %s78
    %p85 = scmp.eq.s32.totalorder %s14, 1
    %p86 = por %p84, %p85
    %p87 = scmp.ne.s32.totalorder %s78, %s79
    %p88 = scmp.eq.s32.totalorder %s14, 0
    %p89 = por %p87, %p88
    %p90 = scmp.ne.s32.totalorder %s78, %s79
    %p91 = scmp.eq.s32.totalorder %s15, 1
    %p92 = por %p90, %p91
    %p94 = scmp.ne.s32.totalorder %s79, %s93
    %p95 = scmp.eq.s32.totalorder %s15, 0
    %p96 = por %p94, %p95
    %s97 = ssub.s32 %s16, %s28
    %s98 = ssub.s32 %s17, %s24
    %s99 = sor.u32 %s97, %s98
    %p100 = scmp.eq.s32.totalorder %s99, 0
    %s102 = sadd.s32 %s101, 1
    %s103 = scalar_select %p100, %s101, %s102
    %p106 = pneg %p100
    %p107 = scmp.eq.s32.totalorder %s9, 1
    %p108 = por %p106, %p107
    %p109 = scmp.ne.s32.totalorder %s101, %s104
    %p110 = scmp.eq.s32.totalorder %s9, 0
    %p111 = por %p109, %p110
    %p112 = scmp.ne.s32.totalorder %s101, %s104
    %p113 = scmp.eq.s32.totalorder %s14, 1
    %p114 = por %p112, %p113
    %p115 = scmp.ne.s32.totalorder %s104, %s105
    %p116 = scmp.eq.s32.totalorder %s14, 0
    %p117 = por %p115, %p116
    %p118 = scmp.ne.s32.totalorder %s104, %s105
    %p119 = scmp.eq.s32.totalorder %s15, 1
    %p120 = por %p118, %p119
    %p122 = scmp.ne.s32.totalorder %s105, %s121
    %p123 = scmp.eq.s32.totalorder %s15, 0
    %p124 = por %p122, %p123
    %p125 = scmp.le.s32.totalorder 1, %s9
    %p126 = scmp.lt.s32.totalorder %s9, 3
    %p127 = pnand %p125, %p126
    %p128 = pneg %p127
    // Predicated region
    $region9: #{tpu_custom_call.1} parent=5 // pred_check
      _
    $region10: #{tpu_custom_call.1} parent=5 // pred_check_branch
      %130 = sbr.rel (%p127) target = $region12
    $region11: #{tpu_custom_call.1} parent=5 // pred_region
      %s131 = ssub.s32 %s9, 1
      // Predicated region
      $region13: #{tpu_custom_call.1} parent=11 // pred_check
        %p132 = pneg %p68
      $region14: #{tpu_custom_call.1} parent=11 // pred_check_branch
        %134 = sbr.rel (%p132) target = $region16
      $region15: #{tpu_custom_call.1} parent=11 // pred_region
        _
      $region16: #{tpu_custom_call.1} parent=11 // pred_fallthru
        _
      // Predicated region
      $region17: #{tpu_custom_call.1} parent=11 // pred_check
        %p135 = pneg %p89
      $region18: #{tpu_custom_call.1} parent=11 // pred_check_branch
        %137 = sbr.rel (%p135) target = $region20
      $region19: #{tpu_custom_call.1} parent=11 // pred_region
        _
      $region20: #{tpu_custom_call.1} parent=11 // pred_fallthru
        _
    $region12: #{tpu_custom_call.1} parent=5 // pred_fallthru
      _
    %p138 = scmp.lt.s32.totalorder %s9, 2
    // Predicated region
    $region21: #{tpu_custom_call.1} parent=5 // pred_check
      %p139 = pneg %p138
    $region22: #{tpu_custom_call.1} parent=5 // pred_check_branch
      %141 = sbr.rel (%p139) target = $region24
    $region23: #{tpu_custom_call.1} parent=5 // pred_region
      // Predicated region
      $region25: #{tpu_custom_call.1} parent=23 // pred_check
        %p142 = pneg %p41
      $region26: #{tpu_custom_call.1} parent=23 // pred_check_branch
        %144 = sbr.rel (%p142) target = $region28
      $region27: #{tpu_custom_call.1} parent=23 // pred_region
        %p145 = scmp.lt.s32.totalorder %s16, 1
        %s146 = scalar_select %p145, %s16, 1
        %s147 = smul.addr %s146, 18
        %s148 = smul.addr %s147, 4
        %s149 = scalar_lea.vmem %s0, %s148
      $region28: #{tpu_custom_call.1} parent=23 // pred_fallthru
        _
    $region24: #{tpu_custom_call.1} parent=5 // pred_fallthru
      _
    %p150 = scmp.le.s32.totalorder 1, %s9
    %p151 = scmp.lt.s32.totalorder %s9, 3
    %p152 = pnand %p150, %p151
    %p153 = pneg %p152
    // Predicated region
    $region29: #{tpu_custom_call.1} parent=5 // pred_check
      _
    $region30: #{tpu_custom_call.1} parent=5 // pred_check_branch
      %155 = sbr.rel (%p152) target = $region32
    $region31: #{tpu_custom_call.1} parent=5 // pred_region
      %s156 = ssub.s32 %s9, 1
      %p157 = scmp.lt.s32.totalorder %s18, 1
      %s158 = scalar_select %p157, %s18, 1
      %s159 = smul.addr %s158, 18
      %s160 = smul.addr %s159, 4
      %s161 = scalar_lea.vmem %s0, %s160
      %p162 = pneg %p47
      %p163 = pneg %p44
      %p164 = pneg %p68
      %p165 = pneg %p65
      %p166 = pneg %p89
      %p167 = pneg %p86
      %p168 = pneg %p117
      %p169 = pneg %p114
      %s170 = smul.u32 12, %s19
      %p171 = scmp.lt.s32.totalorder %s18, 1
      %s172 = scalar_select %p171, %s18, 1
      %p173 = scmp.lt.s32.totalorder %s170, 11
      %s174 = scalar_select %p173, %s170, 11
      %s175 = smul.addr %s172, 12
      %s176 = sadd.s32 %s174, %s175
      %s177 = smul.addr %s176, 8
      %s178 = scalar_lea.vmem %s3, %s177
      %p179 = scmp.lt.s32.totalorder %s18, 1
      %s180 = scalar_select %p179, %s18, 1
      %s181 = smul.addr %s180, 18
      %s182 = smul.addr %s181, 4
      %s183 = scalar_lea.vmem %s0, %s182
      %s184 = smul.u32 12, %s19
      %p185 = scmp.lt.s32.totalorder %s18, 1
      %s186 = scalar_select %p185, %s18, 1
      %p187 = scmp.lt.s32.totalorder %s184, 11
      %s188 = scalar_select %p187, %s184, 11
      %s189 = smul.addr %s186, 12
      %s190 = sadd.s32 %s188, %s189
      %s191 = smul.addr %s190, 8
      %s192 = scalar_lea.vmem %s3, %s191
      %s193 = smul.u32 12, %s19
      %v195 = vld [vmem:[%s183] sm:$0xf]
      %v196 = vld [vmem:[%s183 + $0x4] sm:$0xf]
      %v197 = vld [vmem:[%s183 + $0x8] sm:$0xf]
      %v198 = vld [vmem:[%s183 + $0xc] sm:$0xf]
      %v199 = vld [vmem:[%s183 + $0x10] sm:$0xf]
      %v200 = vld [vmem:[%s183 + $0x14] sm:$0xf]
      %v201 = vld [vmem:[%s183 + $0x18] sm:$0xf]
      %v202 = vld [vmem:[%s183 + $0x1c] sm:$0xf]
      %v203 = vld [vmem:[%s183 + $0x20] sm:$0xf]
      %v204 = vld [vmem:[%s183 + $0x24] sm:$0xf]
      %v205 = vld [vmem:[%s183 + $0x28] sm:$0xf]
      %v206 = vld [vmem:[%s183 + $0x2c] sm:$0xf]
      %v207 = vld [vmem:[%s1] sm:$0xf]
      %v208 = vld [vmem:[%s1 + $0x4] sm:$0x3]
      %v209 = vld [vmem:[%s183 + $0x30] sm:$0x1]
      %s210 = scalar_lea.vmem %s1, 8
      %v211 = vld [vmem:[%s210] sm:$0xf]
      %v212 = vld [vmem:[%s210 + $0x4] sm:$0x3]
      %v226 = vunpack.c.l.b16 %v195
      %v227 = vunpack.c.l.b16 %v196
      %v228 = vunpack.c.l.b16 %v197
      %v229 = vunpack.c.l.b16 %v198
      %v230 = vunpack.c.l.b16 %v199
      %v231 = vunpack.c.l.b16 %v200
      %v232 = vunpack.c.l.b16 %v201
      %v233 = vunpack.c.l.b16 %v202
      %v234 = vunpack.c.l.b16 %v203
      %v235 = vunpack.c.l.b16 %v204
      %v236 = vunpack.c.l.b16 %v205
      %v237 = vunpack.c.l.b16 %v206
      %v238 = vunpack.c.l.b16 %v209
      %v239 = vpack.c.b16 %v227, %v226
      %v240 = vpack.c.b16 %v229, %v228
      %v241 = vpack.c.b16 %v231, %v230
      %v242 = vpack.c.b16 %v233, %v232
      %v243 = vpack.c.b16 %v235, %v234
      %v244 = vpack.c.b16 %v237, %v236
      %v245 = vpack.c.b16 %v238, %v238
      %vm246 = vsmask.f32 7424
      %v248 = vshrl.u32 %v239, 16
      %v250 = vshll.u32 %v239, 16
      %v252 = vrot.slane %v250, 1
      %v253 = vor.u32 %v248, %v252
      %v255 = vshll.u32 %v240, 16
      %v257 = vrot.slane %v255, 1
      %v258 = vsel %vm246, %v253, %v257
      %v259 = vshrl.u32 %v240, 16
      %v261 = vor.u32 %v259, %v257
      %v263 = vshll.u32 %v241, 16
      %v265 = vrot.slane %v263, 1
      %v266 = vsel %vm246, %v261, %v265
      %v267 = vshrl.u32 %v241, 16
      %v269 = vor.u32 %v267, %v265
      %v271 = vshll.u32 %v242, 16
      %v273 = vrot.slane %v271, 1
      %v274 = vsel %vm246, %v269, %v273
      %v275 = vshrl.u32 %v242, 16
      %v277 = vor.u32 %v275, %v273
      %v279 = vshll.u32 %v243, 16
      %v281 = vrot.slane %v279, 1
      %v282 = vsel %vm246, %v277, %v281
      %v283 = vshrl.u32 %v243, 16
      %v285 = vor.u32 %v283, %v281
      %v287 = vshll.u32 %v244, 16
      %v289 = vrot.slane %v287, 1
      %v290 = vsel %vm246, %v285, %v289
      %v291 = vshrl.u32 %v244, 16
      %v293 = vor.u32 %v291, %v289
      %v295 = vshll.u32 %v245, 16
      %v297 = vrot.slane %v295, 1
      %v298 = vsel %vm246, %v293, %v297
      %v301 = vunpack.c.l.b16 %v211
      %v302 = vunpack.c.l.b16 %v212
      %v303 = vpack.c.b16 %v302, %v301
      %vm304 = vcmask 97280
      %v306 = vsel %vm304, %v258, 0
      %v309 = vsel %vm304, %v266, 0
      %v312 = vsel %vm304, %v274, 0
      %v315 = vsel %vm304, %v282, 0
      %v318 = vsel %vm304, %v290, 0
      %v321 = vsel %vm304, %v298, 0
      %vm323 = vcmask 1045504
      %v325 = vsel %vm323, %v303, 0
      %327 = vmatprep.subr.bf16.mxu0 0
      %328 = vmatpush1.bf16.msra.mxu0 0
      %329 = vmatprep.subr.bf16.mxu0 0
      %330 = vmatpush1.bf16.msra.mxu0 0
      %331 = vmatprep.subr.bf16.mxu0 0
      %332 = vmatpush1.bf16.msra.mxu0 0
      %333 = vmatprep.subr.bf16.mxu0 0
      %334 = vmatpush1.bf16.msra.mxu0 0
      %335 = vmatprep.subr.bf16.mxu0 0
      %336 = vmatpush1.bf16.msra.mxu0 0
      %337 = vmatprep.subr.bf16.mxu0 0
      %338 = vmatpush1.bf16.msra.mxu0 0
      %339 = vmatprep.subr.bf16.mxu0 0
      %340 = vmatpush1.bf16.msra.mxu0 0
      %341 = vmatprep.subr.bf16.mxu0 0
      %342 = vmatpush1.bf16.msra.mxu0 %v325
      %343 = vmatprep.subr.bf16.mxu0 0
      %344 = vmatpush2.bf16.msra.mxu0 0
      %345 = vmatprep.subr.bf16.mxu0 0
      %346 = vmatpush2.bf16.msra.mxu0 0
      %347 = vmatprep.subr.bf16.mxu0 0
      %348 = vmatpush2.bf16.msra.mxu0 0
      %349 = vmatprep.subr.bf16.mxu0 0
      %350 = vmatpush2.bf16.msra.mxu0 0
      %351 = vmatprep.subr.bf16.mxu0 0
      %352 = vmatpush2.bf16.msra.mxu0 0
      %353 = vmatprep.subr.bf16.mxu0 0
      %354 = vmatpush2.bf16.msra.mxu0 0
      %355 = vmatprep.subr.bf16.mxu0 0
      %356 = vmatpush2.bf16.msra.mxu0 0
      %357 = vmatprep.subr.bf16.mxu0 0
      %358 = vmatpush2.bf16.msra.mxu0 0
      %359 = vmatprep.mubr.bf16.mxu0 0
      %360 = vmatmul.mubr.bf16.gmra.mxu0 %v306
      %v361 = vpop.f32.mrf.mxu0
      %v362 = vadd.f32 0.0, %v361
      %v363 = vpop.f32.mrf.mxu0
      %v364 = vpop.f32.mrf.mxu0
      %v365 = vadd.f32 0.0, %v364
      %v366 = vpop.f32.mrf.mxu0
      %367 = vmatprep.mubr.bf16.mxu0 0
      %368 = vmatmul.mubr.bf16.gmra.mxu0 %v309
      %v369 = vpop.f32.mrf.mxu0
      %v370 = vadd.f32 0.0, %v369
      %v371 = vpop.f32.mrf.mxu0
      %v372 = vpop.f32.mrf.mxu0
      %v373 = vadd.f32 0.0, %v372
      %v374 = vpop.f32.mrf.mxu0
      %375 = vmatprep.mubr.bf16.mxu0 0
      %376 = vmatmul.mubr.bf16.gmra.mxu0 %v312
      %v377 = vpop.f32.mrf.mxu0
      %v378 = vadd.f32 0.0, %v377
      %v379 = vpop.f32.mrf.mxu0
      %v380 = vpop.f32.mrf.mxu0
      %v381 = vadd.f32 0.0, %v380
      %v382 = vpop.f32.mrf.mxu0
      %383 = vmatprep.mubr.bf16.mxu0 0
      %384 = vmatmul.mubr.bf16.gmra.mxu0 %v315
      %v385 = vpop.f32.mrf.mxu0
      %v386 = vadd.f32 0.0, %v385
      %v387 = vpop.f32.mrf.mxu0
      %v388 = vpop.f32.mrf.mxu0
      %v389 = vadd.f32 0.0, %v388
      %v390 = vpop.f32.mrf.mxu0
      %391 = vmatprep.mubr.bf16.mxu0 0
      %392 = vmatmul.mubr.bf16.gmra.mxu0 %v318
      %v393 = vpop.f32.mrf.mxu0
      %v394 = vadd.f32 0.0, %v393
      %v395 = vpop.f32.mrf.mxu0
      %v396 = vpop.f32.mrf.mxu0
      %v397 = vadd.f32 0.0, %v396
      %v398 = vpop.f32.mrf.mxu0
      %399 = vmatprep.mubr.bf16.mxu0 0
      %400 = vmatmul.mubr.bf16.gmra.mxu0 %v321
      %v401 = vpop.f32.mrf.mxu0
      %v402 = vadd.f32 0.0, %v401
      %v403 = vpop.f32.mrf.mxu0
      %v404 = vpop.f32.mrf.mxu0
      %v405 = vadd.f32 0.0, %v404
      %v406 = vpop.f32.mrf.mxu0
      %407 = vdwg.mxu0
      %v410 = vunpack.c.l.b16 %v207
      %v411 = vunpack.c.l.b16 %v208
      %v412 = vpack.c.b16 %v411, %v410
      %v413 = vsel %vm304, %v239, 0
      %v415 = vsel %vm304, %v240, 0
      %v417 = vsel %vm304, %v241, 0
      %v419 = vsel %vm304, %v242, 0
      %v421 = vsel %vm304, %v243, 0
      %v423 = vsel %vm304, %v244, 0
      %v426 = vsel %vm323, %v412, 0
      %428 = vmatprep.subr.bf16.mxu0 0
      %429 = vmatpush1.bf16.msra.mxu0 0
      %430 = vmatprep.subr.bf16.mxu0 0
      %431 = vmatpush1.bf16.msra.mxu0 0
      %432 = vmatprep.subr.bf16.mxu0 0
      %433 = vmatpush1.bf16.msra.mxu0 0
      %434 = vmatprep.subr.bf16.mxu0 0
      %435 = vmatpush1.bf16.msra.mxu0 0
      %436 = vmatprep.subr.bf16.mxu0 0
      %437 = vmatpush1.bf16.msra.mxu0 0
      %438 = vmatprep.subr.bf16.mxu0 0
      %439 = vmatpush1.bf16.msra.mxu0 0
      %440 = vmatprep.subr.bf16.mxu0 0
      %441 = vmatpush1.bf16.msra.mxu0 0
      %442 = vmatprep.subr.bf16.mxu0 0
      %443 = vmatpush1.bf16.msra.mxu0 %v426
      %444 = vmatprep.subr.bf16.mxu0 0
      %445 = vmatpush2.bf16.msra.mxu0 0
      %446 = vmatprep.subr.bf16.mxu0 0
      %447 = vmatpush2.bf16.msra.mxu0 0
      %448 = vmatprep.subr.bf16.mxu0 0
      %449 = vmatpush2.bf16.msra.mxu0 0
      %450 = vmatprep.subr.bf16.mxu0 0
      %451 = vmatpush2.bf16.msra.mxu0 0
      %452 = vmatprep.subr.bf16.mxu0 0
      %453 = vmatpush2.bf16.msra.mxu0 0
      %454 = vmatprep.subr.bf16.mxu0 0
      %455 = vmatpush2.bf16.msra.mxu0 0
      %456 = vmatprep.subr.bf16.mxu0 0
      %457 = vmatpush2.bf16.msra.mxu0 0
      %458 = vmatprep.subr.bf16.mxu0 0
      %459 = vmatpush2.bf16.msra.mxu0 0
      %460 = vmatprep.mubr.bf16.mxu0 0
      %461 = vmatmul.mubr.bf16.gmra.mxu0 %v413
      %v462 = vpop.f32.mrf.mxu0
      %v463 = vadd.f32 %v362, %v462
      %v464 = vpop.f32.mrf.mxu0
      %v465 = vpop.f32.mrf.mxu0
      %v466 = vadd.f32 %v365, %v465
      %v467 = vpop.f32.mrf.mxu0
      %468 = vmatprep.mubr.bf16.mxu0 0
      %469 = vmatmul.mubr.bf16.gmra.mxu0 %v415
      %v470 = vpop.f32.mrf.mxu0
      %v471 = vadd.f32 %v370, %v470
      %v472 = vpop.f32.mrf.mxu0
      %v473 = vpop.f32.mrf.mxu0
      %v474 = vadd.f32 %v373, %v473
      %v475 = vpop.f32.mrf.mxu0
      %476 = vmatprep.mubr.bf16.mxu0 0
      %477 = vmatmul.mubr.bf16.gmra.mxu0 %v417
      %v478 = vpop.f32.mrf.mxu0
      %v479 = vadd.f32 %v378, %v478
      %v480 = vpop.f32.mrf.mxu0
      %v481 = vpop.f32.mrf.mxu0
      %v482 = vadd.f32 %v381, %v481
      %v483 = vpop.f32.mrf.mxu0
      %484 = vmatprep.mubr.bf16.mxu0 0
      %485 = vmatmul.mubr.bf16.gmra.mxu0 %v419
      %v486 = vpop.f32.mrf.mxu0
      %v487 = vadd.f32 %v386, %v486
      %v488 = vpop.f32.mrf.mxu0
      %v489 = vpop.f32.mrf.mxu0
      %v490 = vadd.f32 %v389, %v489
      %v491 = vpop.f32.mrf.mxu0
      %492 = vmatprep.mubr.bf16.mxu0 0
      %493 = vmatmul.mubr.bf16.gmra.mxu0 %v421
      %v494 = vpop.f32.mrf.mxu0
      %v495 = vadd.f32 %v394, %v494
      %v496 = vpop.f32.mrf.mxu0
      %v497 = vpop.f32.mrf.mxu0
      %v498 = vadd.f32 %v397, %v497
      %v499 = vpop.f32.mrf.mxu0
      %500 = vmatprep.mubr.bf16.mxu0 0
      %501 = vmatmul.mubr.bf16.gmra.mxu0 %v423
      %v502 = vpop.f32.mrf.mxu0
      %v503 = vadd.f32 %v402, %v502
      %v504 = vpop.f32.mrf.mxu0
      %v505 = vpop.f32.mrf.mxu0
      %v506 = vadd.f32 %v405, %v505
      %v507 = vpop.f32.mrf.mxu0
      %508 = vdwg.mxu0
      %v509 = vld [vmem:[%s183] sm:$0xe]
      %s510 = scalar_lea.vmem %s1, 16
      %v511 = vld [vmem:[%s510] sm:$0xf]
      %v512 = vld [vmem:[%s510 + $0x4] sm:$0x3]
      %v514 = vunpack.c.l.b16 %v509
      %v515 = vpack.c.b16 %v227, %v514
      %vm516 = vcmask 1046528
      %v517 = vrot.slane %v515, 1
      %v518 = vrot.slane %v240, 1
      %v519 = vsel %vm516, %v517, %v518
      %v520 = vrot.slane %v241, 1
      %v521 = vsel %vm516, %v518, %v520
      %v522 = vrot.slane %v242, 1
      %v523 = vsel %vm516, %v520, %v522
      %v524 = vrot.slane %v243, 1
      %v525 = vsel %vm516, %v522, %v524
      %v526 = vrot.slane %v244, 1
      %v527 = vsel %vm516, %v524, %v526
      %v528 = vrot.slane %v245, 1
      %v529 = vsel %vm516, %v526, %v528
      %v532 = vunpack.c.l.b16 %v511
      %v533 = vunpack.c.l.b16 %v512
      %v534 = vpack.c.b16 %v533, %v532
      %v536 = vsel %vm304, %v519, 0
      %v539 = vsel %vm304, %v521, 0
      %v542 = vsel %vm304, %v523, 0
      %v545 = vsel %vm304, %v525, 0
      %v548 = vsel %vm304, %v527, 0
      %v551 = vsel %vm304, %v529, 0
      %v554 = vsel %vm323, %v534, 0
      %556 = vmatprep.subr.bf16.mxu0 0
      %557 = vmatpush1.bf16.msra.mxu0 0
      %558 = vmatprep.subr.bf16.mxu0 0
      %559 = vmatpush1.bf16.msra.mxu0 0
      %560 = vmatprep.subr.bf16.mxu0 0
      %561 = vmatpush1.bf16.msra.mxu0 0
      %562 = vmatprep.subr.bf16.mxu0 0
      %563 = vmatpush1.bf16.msra.mxu0 0
      %564 = vmatprep.subr.bf16.mxu0 0
      %565 = vmatpush1.bf16.msra.mxu0 0
      %566 = vmatprep.subr.bf16.mxu0 0
      %567 = vmatpush1.bf16.msra.mxu0 0
      %568 = vmatprep.subr.bf16.mxu0 0
      %569 = vmatpush1.bf16.msra.mxu0 0
      %570 = vmatprep.subr.bf16.mxu0 0
      %571 = vmatpush1.bf16.msra.mxu0 %v554
      %572 = vmatprep.subr.bf16.mxu0 0
      %573 = vmatpush2.bf16.msra.mxu0 0
      %574 = vmatprep.subr.bf16.mxu0 0
      %575 = vmatpush2.bf16.msra.mxu0 0
      %576 = vmatprep.subr.bf16.mxu0 0
      %577 = vmatpush2.bf16.msra.mxu0 0
      %578 = vmatprep.subr.bf16.mxu0 0
      %579 = vmatpush2.bf16.msra.mxu0 0
      %580 = vmatprep.subr.bf16.mxu0 0
      %581 = vmatpush2.bf16.msra.mxu0 0
      %582 = vmatprep.subr.bf16.mxu0 0
      %583 = vmatpush2.bf16.msra.mxu0 0
      %584 = vmatprep.subr.bf16.mxu0 0
      %585 = vmatpush2.bf16.msra.mxu0 0
      %586 = vmatprep.subr.bf16.mxu0 0
      %587 = vmatpush2.bf16.msra.mxu0 0
      %588 = vmatprep.mubr.bf16.mxu0 0
      %589 = vmatmul.mubr.bf16.gmra.mxu0 %v536
      %v590 = vpop.f32.mrf.mxu0
      %v591 = vadd.f32 0.0, %v590
      %v592 = vpop.f32.mrf.mxu0
      %v593 = vpop.f32.mrf.mxu0
      %v594 = vadd.f32 0.0, %v593
      %v595 = vpop.f32.mrf.mxu0
      %596 = vmatprep.mubr.bf16.mxu0 0
      %597 = vmatmul.mubr.bf16.gmra.mxu0 %v539
      %v598 = vpop.f32.mrf.mxu0
      %v599 = vadd.f32 0.0, %v598
      %v600 = vpop.f32.mrf.mxu0
      %v601 = vpop.f32.mrf.mxu0
      %v602 = vadd.f32 0.0, %v601
      %v603 = vpop.f32.mrf.mxu0
      %604 = vmatprep.mubr.bf16.mxu0 0
      %605 = vmatmul.mubr.bf16.gmra.mxu0 %v542
      %v606 = vpop.f32.mrf.mxu0
      %v607 = vadd.f32 0.0, %v606
      %v608 = vpop.f32.mrf.mxu0
      %v609 = vpop.f32.mrf.mxu0
      %v610 = vadd.f32 0.0, %v609
      %v611 = vpop.f32.mrf.mxu0
      %612 = vmatprep.mubr.bf16.mxu0 0
      %613 = vmatmul.mubr.bf16.gmra.mxu0 %v545
      %v614 = vpop.f32.mrf.mxu0
      %v615 = vadd.f32 0.0, %v614
      %v616 = vpop.f32.mrf.mxu0
      %v617 = vpop.f32.mrf.mxu0
      %v618 = vadd.f32 0.0, %v617
      %v619 = vpop.f32.mrf.mxu0
      %620 = vmatprep.mubr.bf16.mxu0 0
      %621 = vmatmul.mubr.bf16.gmra.mxu0 %v548
      %v622 = vpop.f32.mrf.mxu0
      %v623 = vadd.f32 0.0, %v622
      %v624 = vpop.f32.mrf.mxu0
      %v625 = vpop.f32.mrf.mxu0
      %v626 = vadd.f32 0.0, %v625
      %v627 = vpop.f32.mrf.mxu0
      %628 = vmatprep.mubr.bf16.mxu0 0
      %629 = vmatmul.mubr.bf16.gmra.mxu0 %v551
      %v630 = vpop.f32.mrf.mxu0
      %v631 = vadd.f32 0.0, %v630
      %v632 = vpop.f32.mrf.mxu0
      %v633 = vpop.f32.mrf.mxu0
      %v634 = vadd.f32 0.0, %v633
      %v635 = vpop.f32.mrf.mxu0
      %636 = vdwg.mxu0
      %v637 = vadd.f32 %v463, %v591
      %v638 = vadd.f32 %v466, %v594
      %v639 = vadd.f32 %v471, %v599
      %v640 = vadd.f32 %v474, %v602
      %v641 = vadd.f32 %v479, %v607
      %v642 = vadd.f32 %v482, %v610
      %v643 = vadd.f32 %v487, %v615
      %v644 = vadd.f32 %v490, %v618
      %v645 = vadd.f32 %v495, %v623
      %v646 = vadd.f32 %v498, %v626
      %v647 = vadd.f32 %v503, %v631
      %v648 = vadd.f32 %v506, %v634
      %v649 = vld [vmem:[%s183 + $0x8] sm:$0xf]
      %v650 = vld [vmem:[%s183 + $0xc] sm:$0xf]
      %v651 = vld [vmem:[%s183 + $0x10] sm:$0xf]
      %v652 = vld [vmem:[%s183 + $0x14] sm:$0xf]
      %v653 = vld [vmem:[%s183 + $0x18] sm:$0xf]
      %v654 = vld [vmem:[%s183 + $0x1c] sm:$0xf]
      %v655 = vld [vmem:[%s183 + $0x20] sm:$0xf]
      %v656 = vld [vmem:[%s183 + $0x24] sm:$0xf]
      %v657 = vld [vmem:[%s183 + $0x28] sm:$0xf]
      %v658 = vld [vmem:[%s183 + $0x2c] sm:$0xf]
      %v659 = vld [vmem:[%s183 + $0x30] sm:$0xf]
      %v660 = vld [vmem:[%s183 + $0x34] sm:$0xf]
      %s661 = scalar_lea.vmem %s1, 24
      %v662 = vld [vmem:[%s661] sm:$0xf]
      %v663 = vld [vmem:[%s661 + $0x4] sm:$0x3]
      %v676 = vunpack.c.l.b16 %v649
      %v677 = vunpack.c.l.b16 %v650
      %v678 = vunpack.c.l.b16 %v651
      %v679 = vunpack.c.l.b16 %v652
      %v680 = vunpack.c.l.b16 %v653
      %v681 = vunpack.c.l.b16 %v654
      %v682 = vunpack.c.l.b16 %v655
      %v683 = vunpack.c.l.b16 %v656
      %v684 = vunpack.c.l.b16 %v657
      %v685 = vunpack.c.l.b16 %v658
      %v686 = vunpack.c.l.b16 %v659
      %v687 = vunpack.c.l.b16 %v660
      %v688 = vpack.c.b16 %v677, %v676
      %v689 = vpack.c.b16 %v679, %v678
      %v690 = vpack.c.b16 %v681, %v680
      %v691 = vpack.c.b16 %v683, %v682
      %v692 = vpack.c.b16 %v685, %v684
      %v693 = vpack.c.b16 %v687, %v686
      %v696 = vunpack.c.l.b16 %v662
      %v697 = vunpack.c.l.b16 %v663
      %v698 = vpack.c.b16 %v697, %v696
      %v700 = vsel %vm304, %v688, 0
      %v703 = vsel %vm304, %v689, 0
      %v706 = vsel %vm304, %v690, 0
      %v709 = vsel %vm304, %v691, 0
      %v712 = vsel %vm304, %v692, 0
      %v715 = vsel %vm304, %v693, 0
      %v718 = vsel %vm323, %v698, 0
      %720 = vmatprep.subr.bf16.mxu0 0
      %721 = vmatpush1.bf16.msra.mxu0 0
      %722 = vmatprep.subr.bf16.mxu0 0
      %723 = vmatpush1.bf16.msra.mxu0 0
      %724 = vmatprep.subr.bf16.mxu0 0
      %725 = vmatpush1.bf16.msra.mxu0 0
      %726 = vmatprep.subr.bf16.mxu0 0
      %727 = vmatpush1.bf16.msra.mxu0 0
      %728 = vmatprep.subr.bf16.mxu0 0
      %729 = vmatpush1.bf16.msra.mxu0 0
      %730 = vmatprep.subr.bf16.mxu0 0
      %731 = vmatpush1.bf16.msra.mxu0 0
      %732 = vmatprep.subr.bf16.mxu0 0
      %733 = vmatpush1.bf16.msra.mxu0 0
      %734 = vmatprep.subr.bf16.mxu0 0
      %735 = vmatpush1.bf16.msra.mxu0 %v718
      %736 = vmatprep.subr.bf16.mxu0 0
      %737 = vmatpush2.bf16.msra.mxu0 0
      %738 = vmatprep.subr.bf16.mxu0 0
      %739 = vmatpush2.bf16.msra.mxu0 0
      %740 = vmatprep.subr.bf16.mxu0 0
      %741 = vmatpush2.bf16.msra.mxu0 0
      %742 = vmatprep.subr.bf16.mxu0 0
      %743 = vmatpush2.bf16.msra.mxu0 0
      %744 = vmatprep.subr.bf16.mxu0 0
      %745 = vmatpush2.bf16.msra.mxu0 0
      %746 = vmatprep.subr.bf16.mxu0 0
      %747 = vmatpush2.bf16.msra.mxu0 0
      %748 = vmatprep.subr.bf16.mxu0 0
      %749 = vmatpush2.bf16.msra.mxu0 0
      %750 = vmatprep.subr.bf16.mxu0 0
      %751 = vmatpush2.bf16.msra.mxu0 0
      %752 = vmatprep.mubr.bf16.mxu0 0
      %753 = vmatmul.mubr.bf16.gmra.mxu0 %v700
      %v754 = vpop.f32.mrf.mxu0
      %v755 = vadd.f32 0.0, %v754
      %v756 = vpop.f32.mrf.mxu0
      %v757 = vpop.f32.mrf.mxu0
      %v758 = vadd.f32 0.0, %v757
      %v759 = vpop.f32.mrf.mxu0
      %760 = vmatprep.mubr.bf16.mxu0 0
      %761 = vmatmul.mubr.bf16.gmra.mxu0 %v703
      %v762 = vpop.f32.mrf.mxu0
      %v763 = vadd.f32 0.0, %v762
      %v764 = vpop.f32.mrf.mxu0
      %v765 = vpop.f32.mrf.mxu0
      %v766 = vadd.f32 0.0, %v765
      %v767 = vpop.f32.mrf.mxu0
      %768 = vmatprep.mubr.bf16.mxu0 0
      %769 = vmatmul.mubr.bf16.gmra.mxu0 %v706
      %v770 = vpop.f32.mrf.mxu0
      %v771 = vadd.f32 0.0, %v770
      %v772 = vpop.f32.mrf.mxu0
      %v773 = vpop.f32.mrf.mxu0
      %v774 = vadd.f32 0.0, %v773
      %v775 = vpop.f32.mrf.mxu0
      %776 = vmatprep.mubr.bf16.mxu0 0
      %777 = vmatmul.mubr.bf16.gmra.mxu0 %v709
      %v778 = vpop.f32.mrf.mxu0
      %v779 = vadd.f32 0.0, %v778
      %v780 = vpop.f32.mrf.mxu0
      %v781 = vpop.f32.mrf.mxu0
      %v782 = vadd.f32 0.0, %v781
      %v783 = vpop.f32.mrf.mxu0
      %784 = vmatprep.mubr.bf16.mxu0 0
      %785 = vmatmul.mubr.bf16.gmra.mxu0 %v712
      %v786 = vpop.f32.mrf.mxu0
      %v787 = vadd.f32 0.0, %v786
      %v788 = vpop.f32.mrf.mxu0
      %v789 = vpop.f32.mrf.mxu0
      %v790 = vadd.f32 0.0, %v789
      %v791 = vpop.f32.mrf.mxu0
      %792 = vmatprep.mubr.bf16.mxu0 0
      %793 = vmatmul.mubr.bf16.gmra.mxu0 %v715
      %v794 = vpop.f32.mrf.mxu0
      %v795 = vadd.f32 0.0, %v794
      %v796 = vpop.f32.mrf.mxu0
      %v797 = vpop.f32.mrf.mxu0
      %v798 = vadd.f32 0.0, %v797
      %v799 = vpop.f32.mrf.mxu0
      %800 = vdwg.mxu0
      %v801 = vadd.f32 %v637, %v755
      %v802 = vadd.f32 %v638, %v758
      %v803 = vadd.f32 %v639, %v763
      %v804 = vadd.f32 %v640, %v766
      %v805 = vadd.f32 %v641, %v771
      %v806 = vadd.f32 %v642, %v774
      %v807 = vadd.f32 %v643, %v779
      %v808 = vadd.f32 %v644, %v782
      %v809 = vadd.f32 %v645, %v787
      %v810 = vadd.f32 %v646, %v790
      %v811 = vadd.f32 %v647, %v795
      %v812 = vadd.f32 %v648, %v798
      %v813 = vld [vmem:[%s183 + $0x8] sm:$0xf]
      %v814 = vld [vmem:[%s183 + $0xc] sm:$0xf]
      %v815 = vld [vmem:[%s183 + $0x10] sm:$0xf]
      %v816 = vld [vmem:[%s183 + $0x14] sm:$0xf]
      %v817 = vld [vmem:[%s183 + $0x18] sm:$0xf]
      %v818 = vld [vmem:[%s183 + $0x1c] sm:$0xf]
      %v819 = vld [vmem:[%s183 + $0x20] sm:$0xf]
      %v820 = vld [vmem:[%s183 + $0x24] sm:$0xf]
      %v821 = vld [vmem:[%s183 + $0x28] sm:$0xf]
      %v822 = vld [vmem:[%s183 + $0x2c] sm:$0xf]
      %v823 = vld [vmem:[%s183 + $0x30] sm:$0xf]
      %v824 = vld [vmem:[%s183 + $0x34] sm:$0xf]
      %v825 = vld [vmem:[%s183 + $0x38] sm:$0x1]
      %s826 = scalar_lea.vmem %s1, 32
      %v827 = vld [vmem:[%s826] sm:$0xf]
      %v828 = vld [vmem:[%s826 + $0x4] sm:$0x3]
      %v842 = vunpack.c.l.b16 %v813
      %v843 = vunpack.c.l.b16 %v814
      %v844 = vunpack.c.l.b16 %v815
      %v845 = vunpack.c.l.b16 %v816
      %v846 = vunpack.c.l.b16 %v817
      %v847 = vunpack.c.l.b16 %v818
      %v848 = vunpack.c.l.b16 %v819
      %v849 = vunpack.c.l.b16 %v820
      %v850 = vunpack.c.l.b16 %v821
      %v851 = vunpack.c.l.b16 %v822
      %v852 = vunpack.c.l.b16 %v823
      %v853 = vunpack.c.l.b16 %v824
      %v854 = vunpack.c.l.b16 %v825
      %v855 = vpack.c.b16 %v843, %v842
      %v856 = vpack.c.b16 %v845, %v844
      %v857 = vpack.c.b16 %v847, %v846
      %v858 = vpack.c.b16 %v849, %v848
      %v859 = vpack.c.b16 %v851, %v850
      %v860 = vpack.c.b16 %v853, %v852
      %v861 = vpack.c.b16 %v854, %v854
      %v863 = vshrl.u32 %v855, 16
      %v865 = vshll.u32 %v855, 16
      %v867 = vrot.slane %v865, 1
      %v868 = vor.u32 %v863, %v867
      %v870 = vshll.u32 %v856, 16
      %v872 = vrot.slane %v870, 1
      %v873 = vsel %vm246, %v868, %v872
      %v874 = vshrl.u32 %v856, 16
      %v876 = vor.u32 %v874, %v872
      %v878 = vshll.u32 %v857, 16
      %v880 = vrot.slane %v878, 1
      %v881 = vsel %vm246, %v876, %v880
      %v882 = vshrl.u32 %v857, 16
      %v884 = vor.u32 %v882, %v880
      %v886 = vshll.u32 %v858, 16
      %v888 = vrot.slane %v886, 1
      %v889 = vsel %vm246, %v884, %v888
      %v890 = vshrl.u32 %v858, 16
      %v892 = vor.u32 %v890, %v888
      %v894 = vshll.u32 %v859, 16
      %v896 = vrot.slane %v894, 1
      %v897 = vsel %vm246, %v892, %v896
      %v898 = vshrl.u32 %v859, 16
      %v900 = vor.u32 %v898, %v896
      %v902 = vshll.u32 %v860, 16
      %v904 = vrot.slane %v902, 1
      %v905 = vsel %vm246, %v900, %v904
      %v906 = vshrl.u32 %v860, 16
      %v908 = vor.u32 %v906, %v904
      %v910 = vshll.u32 %v861, 16
      %v912 = vrot.slane %v910, 1
      %v913 = vsel %vm246, %v908, %v912
      %v916 = vunpack.c.l.b16 %v827
      %v917 = vunpack.c.l.b16 %v828
      %v918 = vpack.c.b16 %v917, %v916
      %v920 = vsel %vm304, %v873, 0
      %v923 = vsel %vm304, %v881, 0
      %v926 = vsel %vm304, %v889, 0
      %v929 = vsel %vm304, %v897, 0
      %v932 = vsel %vm304, %v905, 0
      %v935 = vsel %vm304, %v913, 0
      %v938 = vsel %vm323, %v918, 0
      %940 = vmatprep.subr.bf16.mxu0 0
      %941 = vmatpush1.bf16.msra.mxu0 0
      %942 = vmatprep.subr.bf16.mxu0 0
      %943 = vmatpush1.bf16.msra.mxu0 0
      %944 = vmatprep.subr.bf16.mxu0 0
      %945 = vmatpush1.bf16.msra.mxu0 0
      %946 = vmatprep.subr.bf16.mxu0 0
      %947 = vmatpush1.bf16.msra.mxu0 0
      %948 = vmatprep.subr.bf16.mxu0 0
      %949 = vmatpush1.bf16.msra.mxu0 0
      %950 = vmatprep.subr.bf16.mxu0 0
      %951 = vmatpush1.bf16.msra.mxu0 0
      %952 = vmatprep.subr.bf16.mxu0 0
      %953 = vmatpush1.bf16.msra.mxu0 0
      %954 = vmatprep.subr.bf16.mxu0 0
      %955 = vmatpush1.bf16.msra.mxu0 %v938
      %956 = vmatprep.subr.bf16.mxu0 0
      %957 = vmatpush2.bf16.msra.mxu0 0
      %958 = vmatprep.subr.bf16.mxu0 0
      %959 = vmatpush2.bf16.msra.mxu0 0
      %960 = vmatprep.subr.bf16.mxu0 0
      %961 = vmatpush2.bf16.msra.mxu0 0
      %962 = vmatprep.subr.bf16.mxu0 0
      %963 = vmatpush2.bf16.msra.mxu0 0
      %964 = vmatprep.subr.bf16.mxu0 0
      %965 = vmatpush2.bf16.msra.mxu0 0
      %966 = vmatprep.subr.bf16.mxu0 0
      %967 = vmatpush2.bf16.msra.mxu0 0
      %968 = vmatprep.subr.bf16.mxu0 0
      %969 = vmatpush2.bf16.msra.mxu0 0
      %970 = vmatprep.subr.bf16.mxu0 0
      %971 = vmatpush2.bf16.msra.mxu0 0
      %972 = vmatprep.mubr.bf16.mxu0 0
      %973 = vmatmul.mubr.bf16.gmra.mxu0 %v920
      %v974 = vpop.f32.mrf.mxu0
      %v975 = vadd.f32 0.0, %v974
      %v976 = vpop.f32.mrf.mxu0
      %v977 = vpop.f32.mrf.mxu0
      %v978 = vadd.f32 0.0, %v977
      %v979 = vpop.f32.mrf.mxu0
      %980 = vmatprep.mubr.bf16.mxu0 0
      %981 = vmatmul.mubr.bf16.gmra.mxu0 %v923
      %v982 = vpop.f32.mrf.mxu0
      %v983 = vadd.f32 0.0, %v982
      %v984 = vpop.f32.mrf.mxu0
      %v985 = vpop.f32.mrf.mxu0
      %v986 = vadd.f32 0.0, %v985
      %v987 = vpop.f32.mrf.mxu0
      %988 = vmatprep.mubr.bf16.mxu0 0
      %989 = vmatmul.mubr.bf16.gmra.mxu0 %v926
      %v990 = vpop.f32.mrf.mxu0
      %v991 = vadd.f32 0.0, %v990
      %v992 = vpop.f32.mrf.mxu0
      %v993 = vpop.f32.mrf.mxu0
      %v994 = vadd.f32 0.0, %v993
      %v995 = vpop.f32.mrf.mxu0
      %996 = vmatprep.mubr.bf16.mxu0 0
      %997 = vmatmul.mubr.bf16.gmra.mxu0 %v929
      %v998 = vpop.f32.mrf.mxu0
      %v999 = vadd.f32 0.0, %v998
      %v1000 = vpop.f32.mrf.mxu0
      %v1001 = vpop.f32.mrf.mxu0
      %v1002 = vadd.f32 0.0, %v1001
      %v1003 = vpop.f32.mrf.mxu0
      %1004 = vmatprep.mubr.bf16.mxu0 0
      %1005 = vmatmul.mubr.bf16.gmra.mxu0 %v932
      %v1006 = vpop.f32.mrf.mxu0
      %v1007 = vadd.f32 0.0, %v1006
      %v1008 = vpop.f32.mrf.mxu0
      %v1009 = vpop.f32.mrf.mxu0
      %v1010 = vadd.f32 0.0, %v1009
      %v1011 = vpop.f32.mrf.mxu0
      %1012 = vmatprep.mubr.bf16.mxu0 0
      %1013 = vmatmul.mubr.bf16.gmra.mxu0 %v935
      %v1014 = vpop.f32.mrf.mxu0
      %v1015 = vadd.f32 0.0, %v1014
      %v1016 = vpop.f32.mrf.mxu0
      %v1017 = vpop.f32.mrf.mxu0
      %v1018 = vadd.f32 0.0, %v1017
      %v1019 = vpop.f32.mrf.mxu0
      %1020 = vdwg.mxu0
      %v1021 = vadd.f32 %v801, %v975
      %v1022 = vadd.f32 %v802, %v978
      %v1023 = vadd.f32 %v803, %v983
      %v1024 = vadd.f32 %v804, %v986
      %v1025 = vadd.f32 %v805, %v991
      %v1026 = vadd.f32 %v806, %v994
      %v1027 = vadd.f32 %v807, %v999
      %v1028 = vadd.f32 %v808, %v1002
      %v1029 = vadd.f32 %v809, %v1007
      %v1030 = vadd.f32 %v810, %v1010
      %v1031 = vadd.f32 %v811, %v1015
      %v1032 = vadd.f32 %v812, %v1018
      %v1033 = vld [vmem:[%s183 + $0x8] sm:$0xe]
      %s1034 = scalar_lea.vmem %s1, 40
      %v1035 = vld [vmem:[%s1034] sm:$0xf]
      %v1036 = vld [vmem:[%s1034 + $0x4] sm:$0x3]
      %v1038 = vunpack.c.l.b16 %v1033
      %v1039 = vpack.c.b16 %v843, %v1038
      %v1040 = vrot.slane %v1039, 1
      %v1041 = vrot.slane %v856, 1
      %v1042 = vsel %vm516, %v1040, %v1041
      %v1043 = vrot.slane %v857, 1
      %v1044 = vsel %vm516, %v1041, %v1043
      %v1045 = vrot.slane %v858, 1
      %v1046 = vsel %vm516, %v1043, %v1045
      %v1047 = vrot.slane %v859, 1
      %v1048 = vsel %vm516, %v1045, %v1047
      %v1049 = vrot.slane %v860, 1
      %v1050 = vsel %vm516, %v1047, %v1049
      %v1051 = vrot.slane %v861, 1
      %v1052 = vsel %vm516, %v1049, %v1051
      %v1055 = vunpack.c.l.b16 %v1035
      %v1056 = vunpack.c.l.b16 %v1036
      %v1057 = vpack.c.b16 %v1056, %v1055
      %v1059 = vsel %vm304, %v1042, 0
      %v1062 = vsel %vm304, %v1044, 0
      %v1065 = vsel %vm304, %v1046, 0
      %v1068 = vsel %vm304, %v1048, 0
      %v1071 = vsel %vm304, %v1050, 0
      %v1074 = vsel %vm304, %v1052, 0
      %v1077 = vsel %vm323, %v1057, 0
      %1079 = vmatprep.subr.bf16.mxu0 0
      %1080 = vmatpush1.bf16.msra.mxu0 0
      %1081 = vmatprep.subr.bf16.mxu0 0
      %1082 = vmatpush1.bf16.msra.mxu0 0
      %1083 = vmatprep.subr.bf16.mxu0 0
      %1084 = vmatpush1.bf16.msra.mxu0 0
      %1085 = vmatprep.subr.bf16.mxu0 0
      %1086 = vmatpush1.bf16.msra.mxu0 0
      %1087 = vmatprep.subr.bf16.mxu0 0
      %1088 = vmatpush1.bf16.msra.mxu0 0
      %1089 = vmatprep.subr.bf16.mxu0 0
      %1090 = vmatpush1.bf16.msra.mxu0 0
      %1091 = vmatprep.subr.bf16.mxu0 0
      %1092 = vmatpush1.bf16.msra.mxu0 0
      %1093 = vmatprep.subr.bf16.mxu0 0
      %1094 = vmatpush1.bf16.msra.mxu0 %v1077
      %1095 = vmatprep.subr.bf16.mxu0 0
      %1096 = vmatpush2.bf16.msra.mxu0 0
      %1097 = vmatprep.subr.bf16.mxu0 0
      %1098 = vmatpush2.bf16.msra.mxu0 0
      %1099 = vmatprep.subr.bf16.mxu0 0
      %1100 = vmatpush2.bf16.msra.mxu0 0
      %1101 = vmatprep.subr.bf16.mxu0 0
      %1102 = vmatpush2.bf16.msra.mxu0 0
      %1103 = vmatprep.subr.bf16.mxu0 0
      %1104 = vmatpush2.bf16.msra.mxu0 0
      %1105 = vmatprep.subr.bf16.mxu0 0
      %1106 = vmatpush2.bf16.msra.mxu0 0
      %1107 = vmatprep.subr.bf16.mxu0 0
      %1108 = vmatpush2.bf16.msra.mxu0 0
      %1109 = vmatprep.subr.bf16.mxu0 0
      %1110 = vmatpush2.bf16.msra.mxu0 0
      %1111 = vmatprep.mubr.bf16.mxu0 0
      %1112 = vmatmul.mubr.bf16.gmra.mxu0 %v1059
      %v1113 = vpop.f32.mrf.mxu0
      %v1114 = vadd.f32 0.0, %v1113
      %v1115 = vpop.f32.mrf.mxu0
      %v1116 = vpop.f32.mrf.mxu0
      %v1117 = vadd.f32 0.0, %v1116
      %v1118 = vpop.f32.mrf.mxu0
      %1119 = vmatprep.mubr.bf16.mxu0 0
      %1120 = vmatmul.mubr.bf16.gmra.mxu0 %v1062
      %v1121 = vpop.f32.mrf.mxu0
      %v1122 = vadd.f32 0.0, %v1121
      %v1123 = vpop.f32.mrf.mxu0
      %v1124 = vpop.f32.mrf.mxu0
      %v1125 = vadd.f32 0.0, %v1124
      %v1126 = vpop.f32.mrf.mxu0
      %1127 = vmatprep.mubr.bf16.mxu0 0
      %1128 = vmatmul.mubr.bf16.gmra.mxu0 %v1065
      %v1129 = vpop.f32.mrf.mxu0
      %v1130 = vadd.f32 0.0, %v1129
      %v1131 = vpop.f32.mrf.mxu0
      %v1132 = vpop.f32.mrf.mxu0
      %v1133 = vadd.f32 0.0, %v1132
      %v1134 = vpop.f32.mrf.mxu0
      %1135 = vmatprep.mubr.bf16.mxu0 0
      %1136 = vmatmul.mubr.bf16.gmra.mxu0 %v1068
      %v1137 = vpop.f32.mrf.mxu0
      %v1138 = vadd.f32 0.0, %v1137
      %v1139 = vpop.f32.mrf.mxu0
      %v1140 = vpop.f32.mrf.mxu0
      %v1141 = vadd.f32 0.0, %v1140
      %v1142 = vpop.f32.mrf.mxu0
      %1143 = vmatprep.mubr.bf16.mxu0 0
      %1144 = vmatmul.mubr.bf16.gmra.mxu0 %v1071
      %v1145 = vpop.f32.mrf.mxu0
      %v1146 = vadd.f32 0.0, %v1145
      %v1147 = vpop.f32.mrf.mxu0
      %v1148 = vpop.f32.mrf.mxu0
      %v1149 = vadd.f32 0.0, %v1148
      %v1150 = vpop.f32.mrf.mxu0
      %1151 = vmatprep.mubr.bf16.mxu0 0
      %1152 = vmatmul.mubr.bf16.gmra.mxu0 %v1074
      %v1153 = vpop.f32.mrf.mxu0
      %v1154 = vadd.f32 0.0, %v1153
      %v1155 = vpop.f32.mrf.mxu0
      %v1156 = vpop.f32.mrf.mxu0
      %v1157 = vadd.f32 0.0, %v1156
      %v1158 = vpop.f32.mrf.mxu0
      %1159 = vdwg.mxu0
      %v1160 = vadd.f32 %v1021, %v1114
      %v1161 = vadd.f32 %v1022, %v1117
      %v1162 = vadd.f32 %v1023, %v1122
      %v1163 = vadd.f32 %v1024, %v1125
      %v1164 = vadd.f32 %v1025, %v1130
      %v1165 = vadd.f32 %v1026, %v1133
      %v1166 = vadd.f32 %v1027, %v1138
      %v1167 = vadd.f32 %v1028, %v1141
      %v1168 = vadd.f32 %v1029, %v1146
      %v1169 = vadd.f32 %v1030, %v1149
      %v1170 = vadd.f32 %v1031, %v1154
      %v1171 = vadd.f32 %v1032, %v1157
      %v1172 = vld [vmem:[%s183 + $0x10] sm:$0xf]
      %v1173 = vld [vmem:[%s183 + $0x14] sm:$0xf]
      %v1174 = vld [vmem:[%s183 + $0x18] sm:$0xf]
      %v1175 = vld [vmem:[%s183 + $0x1c] sm:$0xf]
      %v1176 = vld [vmem:[%s183 + $0x20] sm:$0xf]
      %v1177 = vld [vmem:[%s183 + $0x24] sm:$0xf]
      %v1178 = vld [vmem:[%s183 + $0x28] sm:$0xf]
      %v1179 = vld [vmem:[%s183 + $0x2c] sm:$0xf]
      %v1180 = vld [vmem:[%s183 + $0x30] sm:$0xf]
      %v1181 = vld [vmem:[%s183 + $0x34] sm:$0xf]
      %v1182 = vld [vmem:[%s183 + $0x38] sm:$0xf]
      %v1183 = vld [vmem:[%s183 + $0x3c] sm:$0xf]
      %s1184 = scalar_lea.vmem %s1, 48
      %v1185 = vld [vmem:[%s1184] sm:$0xf]
      %v1186 = vld [vmem:[%s1184 + $0x4] sm:$0x3]
      %v1199 = vunpack.c.l.b16 %v1172
      %v1200 = vunpack.c.l.b16 %v1173
      %v1201 = vunpack.c.l.b16 %v1174
      %v1202 = vunpack.c.l.b16 %v1175
      %v1203 = vunpack.c.l.b16 %v1176
      %v1204 = vunpack.c.l.b16 %v1177
      %v1205 = vunpack.c.l.b16 %v1178
      %v1206 = vunpack.c.l.b16 %v1179
      %v1207 = vunpack.c.l.b16 %v1180
      %v1208 = vunpack.c.l.b16 %v1181
      %v1209 = vunpack.c.l.b16 %v1182
      %v1210 = vunpack.c.l.b16 %v1183
      %v1211 = vpack.c.b16 %v1200, %v1199
      %v1212 = vpack.c.b16 %v1202, %v1201
      %v1213 = vpack.c.b16 %v1204, %v1203
      %v1214 = vpack.c.b16 %v1206, %v1205
      %v1215 = vpack.c.b16 %v1208, %v1207
      %v1216 = vpack.c.b16 %v1210, %v1209
      %v1219 = vunpack.c.l.b16 %v1185
      %v1220 = vunpack.c.l.b16 %v1186
      %v1221 = vpack.c.b16 %v1220, %v1219
      %v1223 = vsel %vm304, %v1211, 0
      %v1226 = vsel %vm304, %v1212, 0
      %v1229 = vsel %vm304, %v1213, 0
      %v1232 = vsel %vm304, %v1214, 0
      %v1235 = vsel %vm304, %v1215, 0
      %v1238 = vsel %vm304, %v1216, 0
      %v1241 = vsel %vm323, %v1221, 0
      %1243 = vmatprep.subr.bf16.mxu0 0
      %1244 = vmatpush1.bf16.msra.mxu0 0
      %1245 = vmatprep.subr.bf16.mxu0 0
      %1246 = vmatpush1.bf16.msra.mxu0 0
      %1247 = vmatprep.subr.bf16.mxu0 0
      %1248 = vmatpush1.bf16.msra.mxu0 0
      %1249 = vmatprep.subr.bf16.mxu0 0
      %1250 = vmatpush1.bf16.msra.mxu0 0
      %1251 = vmatprep.subr.bf16.mxu0 0
      %1252 = vmatpush1.bf16.msra.mxu0 0
      %1253 = vmatprep.subr.bf16.mxu0 0
      %1254 = vmatpush1.bf16.msra.mxu0 0
      %1255 = vmatprep.subr.bf16.mxu0 0
      %1256 = vmatpush1.bf16.msra.mxu0 0
      %1257 = vmatprep.subr.bf16.mxu0 0
      %1258 = vmatpush1.bf16.msra.mxu0 %v1241
      %1259 = vmatprep.subr.bf16.mxu0 0
      %1260 = vmatpush2.bf16.msra.mxu0 0
      %1261 = vmatprep.subr.bf16.mxu0 0
      %1262 = vmatpush2.bf16.msra.mxu0 0
      %1263 = vmatprep.subr.bf16.mxu0 0
      %1264 = vmatpush2.bf16.msra.mxu0 0
      %1265 = vmatprep.subr.bf16.mxu0 0
      %1266 = vmatpush2.bf16.msra.mxu0 0
      %1267 = vmatprep.subr.bf16.mxu0 0
      %1268 = vmatpush2.bf16.msra.mxu0 0
      %1269 = vmatprep.subr.bf16.mxu0 0
      %1270 = vmatpush2.bf16.msra.mxu0 0
      %1271 = vmatprep.subr.bf16.mxu0 0
      %1272 = vmatpush2.bf16.msra.mxu0 0
      %1273 = vmatprep.subr.bf16.mxu0 0
      %1274 = vmatpush2.bf16.msra.mxu0 0
      %1275 = vmatprep.mubr.bf16.mxu0 0
      %1276 = vmatmul.mubr.bf16.gmra.mxu0 %v1223
      %v1277 = vpop.f32.mrf.mxu0
      %v1278 = vadd.f32 0.0, %v1277
      %v1279 = vpop.f32.mrf.mxu0
      %v1280 = vpop.f32.mrf.mxu0
      %v1281 = vadd.f32 0.0, %v1280
      %v1282 = vpop.f32.mrf.mxu0
      %1283 = vmatprep.mubr.bf16.mxu0 0
      %1284 = vmatmul.mubr.bf16.gmra.mxu0 %v1226
      %v1285 = vpop.f32.mrf.mxu0
      %v1286 = vadd.f32 0.0, %v1285
      %v1287 = vpop.f32.mrf.mxu0
      %v1288 = vpop.f32.mrf.mxu0
      %v1289 = vadd.f32 0.0, %v1288
      %v1290 = vpop.f32.mrf.mxu0
      %1291 = vmatprep.mubr.bf16.mxu0 0
      %1292 = vmatmul.mubr.bf16.gmra.mxu0 %v1229
      %v1293 = vpop.f32.mrf.mxu0
      %v1294 = vadd.f32 0.0, %v1293
      %v1295 = vpop.f32.mrf.mxu0
      %v1296 = vpop.f32.mrf.mxu0
      %v1297 = vadd.f32 0.0, %v1296
      %v1298 = vpop.f32.mrf.mxu0
      %1299 = vmatprep.mubr.bf16.mxu0 0
      %1300 = vmatmul.mubr.bf16.gmra.mxu0 %v1232
      %v1301 = vpop.f32.mrf.mxu0
      %v1302 = vadd.f32 0.0, %v1301
      %v1303 = vpop.f32.mrf.mxu0
      %v1304 = vpop.f32.mrf.mxu0
      %v1305 = vadd.f32 0.0, %v1304
      %v1306 = vpop.f32.mrf.mxu0
      %1307 = vmatprep.mubr.bf16.mxu0 0
      %1308 = vmatmul.mubr.bf16.gmra.mxu0 %v1235
      %v1309 = vpop.f32.mrf.mxu0
      %v1310 = vadd.f32 0.0, %v1309
      %v1311 = vpop.f32.mrf.mxu0
      %v1312 = vpop.f32.mrf.mxu0
      %v1313 = vadd.f32 0.0, %v1312
      %v1314 = vpop.f32.mrf.mxu0
      %1315 = vmatprep.mubr.bf16.mxu0 0
      %1316 = vmatmul.mubr.bf16.gmra.mxu0 %v1238
      %v1317 = vpop.f32.mrf.mxu0
      %v1318 = vadd.f32 0.0, %v1317
      %v1319 = vpop.f32.mrf.mxu0
      %v1320 = vpop.f32.mrf.mxu0
      %v1321 = vadd.f32 0.0, %v1320
      %v1322 = vpop.f32.mrf.mxu0
      %1323 = vdwg.mxu0
      %v1324 = vadd.f32 %v1160, %v1278
      %v1325 = vadd.f32 %v1161, %v1281
      %v1326 = vadd.f32 %v1162, %v1286
      %v1327 = vadd.f32 %v1163, %v1289
      %v1328 = vadd.f32 %v1164, %v1294
      %v1329 = vadd.f32 %v1165, %v1297
      %v1330 = vadd.f32 %v1166, %v1302
      %v1331 = vadd.f32 %v1167, %v1305
      %v1332 = vadd.f32 %v1168, %v1310
      %v1333 = vadd.f32 %v1169, %v1313
      %v1334 = vadd.f32 %v1170, %v1318
      %v1335 = vadd.f32 %v1171, %v1321
      %v1336 = vld [vmem:[%s183 + $0x10] sm:$0xf]
      %v1337 = vld [vmem:[%s183 + $0x14] sm:$0xf]
      %v1338 = vld [vmem:[%s183 + $0x18] sm:$0xf]
      %v1339 = vld [vmem:[%s183 + $0x1c] sm:$0xf]
      %v1340 = vld [vmem:[%s183 + $0x20] sm:$0xf]
      %v1341 = vld [vmem:[%s183 + $0x24] sm:$0xf]
      %v1342 = vld [vmem:[%s183 + $0x28] sm:$0xf]
      %v1343 = vld [vmem:[%s183 + $0x2c] sm:$0xf]
      %v1344 = vld [vmem:[%s183 + $0x30] sm:$0xf]
      %v1345 = vld [vmem:[%s183 + $0x34] sm:$0xf]
      %v1346 = vld [vmem:[%s183 + $0x38] sm:$0xf]
      %v1347 = vld [vmem:[%s183 + $0x3c] sm:$0xf]
      %v1348 = vld [vmem:[%s183 + $0x40] sm:$0x1]
      %s1349 = scalar_lea.vmem %s1, 56
      %v1350 = vld [vmem:[%s1349] sm:$0xf]
      %v1351 = vld [vmem:[%s1349 + $0x4] sm:$0x3]
      %v1365 = vunpack.c.l.b16 %v1336
      %v1366 = vunpack.c.l.b16 %v1337
      %v1367 = vunpack.c.l.b16 %v1338
      %v1368 = vunpack.c.l.b16 %v1339
      %v1369 = vunpack.c.l.b16 %v1340
      %v1370 = vunpack.c.l.b16 %v1341
      %v1371 = vunpack.c.l.b16 %v1342
      %v1372 = vunpack.c.l.b16 %v1343
      %v1373 = vunpack.c.l.b16 %v1344
      %v1374 = vunpack.c.l.b16 %v1345
      %v1375 = vunpack.c.l.b16 %v1346
      %v1376 = vunpack.c.l.b16 %v1347
      %v1377 = vunpack.c.l.b16 %v1348
      %v1378 = vpack.c.b16 %v1366, %v1365
      %v1379 = vpack.c.b16 %v1368, %v1367
      %v1380 = vpack.c.b16 %v1370, %v1369
      %v1381 = vpack.c.b16 %v1372, %v1371
      %v1382 = vpack.c.b16 %v1374, %v1373
      %v1383 = vpack.c.b16 %v1376, %v1375
      %v1384 = vpack.c.b16 %v1377, %v1377
      %v1386 = vshrl.u32 %v1378, 16
      %v1388 = vshll.u32 %v1378, 16
      %v1390 = vrot.slane %v1388, 1
      %v1391 = vor.u32 %v1386, %v1390
      %v1393 = vshll.u32 %v1379, 16
      %v1395 = vrot.slane %v1393, 1
      %v1396 = vsel %vm246, %v1391, %v1395
      %v1397 = vshrl.u32 %v1379, 16
      %v1399 = vor.u32 %v1397, %v1395
      %v1401 = vshll.u32 %v1380, 16
      %v1403 = vrot.slane %v1401, 1
      %v1404 = vsel %vm246, %v1399, %v1403
      %v1405 = vshrl.u32 %v1380, 16
      %v1407 = vor.u32 %v1405, %v1403
      %v1409 = vshll.u32 %v1381, 16
      %v1411 = vrot.slane %v1409, 1
      %v1412 = vsel %vm246, %v1407, %v1411
      %v1413 = vshrl.u32 %v1381, 16
      %v1415 = vor.u32 %v1413, %v1411
      %v1417 = vshll.u32 %v1382, 16
      %v1419 = vrot.slane %v1417, 1
      %v1420 = vsel %vm246, %v1415, %v1419
      %v1421 = vshrl.u32 %v1382, 16
      %v1423 = vor.u32 %v1421, %v1419
      %v1425 = vshll.u32 %v1383, 16
      %v1427 = vrot.slane %v1425, 1
      %v1428 = vsel %vm246, %v1423, %v1427
      %v1429 = vshrl.u32 %v1383, 16
      %v1431 = vor.u32 %v1429, %v1427
      %v1433 = vshll.u32 %v1384, 16
      %v1435 = vrot.slane %v1433, 1
      %v1436 = vsel %vm246, %v1431, %v1435
      %v1439 = vunpack.c.l.b16 %v1350
      %v1440 = vunpack.c.l.b16 %v1351
      %v1441 = vpack.c.b16 %v1440, %v1439
      %v1443 = vsel %vm304, %v1396, 0
      %v1446 = vsel %vm304, %v1404, 0
      %v1449 = vsel %vm304, %v1412, 0
      %v1452 = vsel %vm304, %v1420, 0
      %v1455 = vsel %vm304, %v1428, 0
      %v1458 = vsel %vm304, %v1436, 0
      %v1461 = vsel %vm323, %v1441, 0
      %1463 = vmatprep.subr.bf16.mxu0 0
      %1464 = vmatpush1.bf16.msra.mxu0 0
      %1465 = vmatprep.subr.bf16.mxu0 0
      %1466 = vmatpush1.bf16.msra.mxu0 0
      %1467 = vmatprep.subr.bf16.mxu0 0
      %1468 = vmatpush1.bf16.msra.mxu0 0
      %1469 = vmatprep.subr.bf16.mxu0 0
      %1470 = vmatpush1.bf16.msra.mxu0 0
      %1471 = vmatprep.subr.bf16.mxu0 0
      %1472 = vmatpush1.bf16.msra.mxu0 0
      %1473 = vmatprep.subr.bf16.mxu0 0
      %1474 = vmatpush1.bf16.msra.mxu0 0
      %1475 = vmatprep.subr.bf16.mxu0 0
      %1476 = vmatpush1.bf16.msra.mxu0 0
      %1477 = vmatprep.subr.bf16.mxu0 0
      %1478 = vmatpush1.bf16.msra.mxu0 %v1461
      %1479 = vmatprep.subr.bf16.mxu0 0
      %1480 = vmatpush2.bf16.msra.mxu0 0
      %1481 = vmatprep.subr.bf16.mxu0 0
      %1482 = vmatpush2.bf16.msra.mxu0 0
      %1483 = vmatprep.subr.bf16.mxu0 0
      %1484 = vmatpush2.bf16.msra.mxu0 0
      %1485 = vmatprep.subr.bf16.mxu0 0
      %1486 = vmatpush2.bf16.msra.mxu0 0
      %1487 = vmatprep.subr.bf16.mxu0 0
      %1488 = vmatpush2.bf16.msra.mxu0 0
      %1489 = vmatprep.subr.bf16.mxu0 0
      %1490 = vmatpush2.bf16.msra.mxu0 0
      %1491 = vmatprep.subr.bf16.mxu0 0
      %1492 = vmatpush2.bf16.msra.mxu0 0
      %1493 = vmatprep.subr.bf16.mxu0 0
      %1494 = vmatpush2.bf16.msra.mxu0 0
      %1495 = vmatprep.mubr.bf16.mxu0 0
      %1496 = vmatmul.mubr.bf16.gmra.mxu0 %v1443
      %v1497 = vpop.f32.mrf.mxu0
      %v1498 = vadd.f32 0.0, %v1497
      %v1499 = vpop.f32.mrf.mxu0
      %v1500 = vpop.f32.mrf.mxu0
      %v1501 = vadd.f32 0.0, %v1500
      %v1502 = vpop.f32.mrf.mxu0
      %1503 = vmatprep.mubr.bf16.mxu0 0
      %1504 = vmatmul.mubr.bf16.gmra.mxu0 %v1446
      %v1505 = vpop.f32.mrf.mxu0
      %v1506 = vadd.f32 0.0, %v1505
      %v1507 = vpop.f32.mrf.mxu0
      %v1508 = vpop.f32.mrf.mxu0
      %v1509 = vadd.f32 0.0, %v1508
      %v1510 = vpop.f32.mrf.mxu0
      %1511 = vmatprep.mubr.bf16.mxu0 0
      %1512 = vmatmul.mubr.bf16.gmra.mxu0 %v1449
      %v1513 = vpop.f32.mrf.mxu0
      %v1514 = vadd.f32 0.0, %v1513
      %v1515 = vpop.f32.mrf.mxu0
      %v1516 = vpop.f32.mrf.mxu0
      %v1517 = vadd.f32 0.0, %v1516
      %v1518 = vpop.f32.mrf.mxu0
      %1519 = vmatprep.mubr.bf16.mxu0 0
      %1520 = vmatmul.mubr.bf16.gmra.mxu0 %v1452
      %v1521 = vpop.f32.mrf.mxu0
      %v1522 = vadd.f32 0.0, %v1521
      %v1523 = vpop.f32.mrf.mxu0
      %v1524 = vpop.f32.mrf.mxu0
      %v1525 = vadd.f32 0.0, %v1524
      %v1526 = vpop.f32.mrf.mxu0
      %1527 = vmatprep.mubr.bf16.mxu0 0
      %1528 = vmatmul.mubr.bf16.gmra.mxu0 %v1455
      %v1529 = vpop.f32.mrf.mxu0
      %v1530 = vadd.f32 0.0, %v1529
      %v1531 = vpop.f32.mrf.mxu0
      %v1532 = vpop.f32.mrf.mxu0
      %v1533 = vadd.f32 0.0, %v1532
      %v1534 = vpop.f32.mrf.mxu0
      %1535 = vmatprep.mubr.bf16.mxu0 0
      %1536 = vmatmul.mubr.bf16.gmra.mxu0 %v1458
      %v1537 = vpop.f32.mrf.mxu0
      %v1538 = vadd.f32 0.0, %v1537
      %v1539 = vpop.f32.mrf.mxu0
      %v1540 = vpop.f32.mrf.mxu0
      %v1541 = vadd.f32 0.0, %v1540
      %v1542 = vpop.f32.mrf.mxu0
      %1543 = vdwg.mxu0
      %v1544 = vadd.f32 %v1324, %v1498
      %v1545 = vadd.f32 %v1325, %v1501
      %v1546 = vadd.f32 %v1326, %v1506
      %v1547 = vadd.f32 %v1327, %v1509
      %v1548 = vadd.f32 %v1328, %v1514
      %v1549 = vadd.f32 %v1329, %v1517
      %v1550 = vadd.f32 %v1330, %v1522
      %v1551 = vadd.f32 %v1331, %v1525
      %v1552 = vadd.f32 %v1332, %v1530
      %v1553 = vadd.f32 %v1333, %v1533
      %v1554 = vadd.f32 %v1334, %v1538
      %v1555 = vadd.f32 %v1335, %v1541
      %v1556 = vld [vmem:[%s183 + $0x10] sm:$0xe]
      %s1557 = scalar_lea.vmem %s1, 64
      %v1558 = vld [vmem:[%s1557] sm:$0xf]
      %v1559 = vld [vmem:[%s1557 + $0x4] sm:$0x3]
      %v1561 = vunpack.c.l.b16 %v1556
      %v1562 = vpack.c.b16 %v1366, %v1561
      %v1563 = vrot.slane %v1562, 1
      %v1564 = vrot.slane %v1379, 1
      %v1565 = vsel %vm516, %v1563, %v1564
      %v1566 = vrot.slane %v1380, 1
      %v1567 = vsel %vm516, %v1564, %v1566
      %v1568 = vrot.slane %v1381, 1
      %v1569 = vsel %vm516, %v1566, %v1568
      %v1570 = vrot.slane %v1382, 1
      %v1571 = vsel %vm516, %v1568, %v1570
      %v1572 = vrot.slane %v1383, 1
      %v1573 = vsel %vm516, %v1570, %v1572
      %v1574 = vrot.slane %v1384, 1
      %v1575 = vsel %vm516, %v1572, %v1574
      %v1578 = vunpack.c.l.b16 %v1558
      %v1579 = vunpack.c.l.b16 %v1559
      %v1580 = vpack.c.b16 %v1579, %v1578
      %v1582 = vsel %vm304, %v1565, 0
      %v1585 = vsel %vm304, %v1567, 0
      %v1588 = vsel %vm304, %v1569, 0
      %v1591 = vsel %vm304, %v1571, 0
      %v1594 = vsel %vm304, %v1573, 0
      %v1597 = vsel %vm304, %v1575, 0
      %v1600 = vsel %vm323, %v1580, 0
      %1602 = vmatprep.subr.bf16.mxu0 0
      %1603 = vmatpush1.bf16.msra.mxu0 0
      %1604 = vmatprep.subr.bf16.mxu0 0
      %1605 = vmatpush1.bf16.msra.mxu0 0
      %1606 = vmatprep.subr.bf16.mxu0 0
      %1607 = vmatpush1.bf16.msra.mxu0 0
      %1608 = vmatprep.subr.bf16.mxu0 0
      %1609 = vmatpush1.bf16.msra.mxu0 0
      %1610 = vmatprep.subr.bf16.mxu0 0
      %1611 = vmatpush1.bf16.msra.mxu0 0
      %1612 = vmatprep.subr.bf16.mxu0 0
      %1613 = vmatpush1.bf16.msra.mxu0 0
      %1614 = vmatprep.subr.bf16.mxu0 0
      %1615 = vmatpush1.bf16.msra.mxu0 0
      %1616 = vmatprep.subr.bf16.mxu0 0
      %1617 = vmatpush1.bf16.msra.mxu0 %v1600
      %1618 = vmatprep.subr.bf16.mxu0 0
      %1619 = vmatpush2.bf16.msra.mxu0 0
      %1620 = vmatprep.subr.bf16.mxu0 0
      %1621 = vmatpush2.bf16.msra.mxu0 0
      %1622 = vmatprep.subr.bf16.mxu0 0
      %1623 = vmatpush2.bf16.msra.mxu0 0
      %1624 = vmatprep.subr.bf16.mxu0 0
      %1625 = vmatpush2.bf16.msra.mxu0 0
      %1626 = vmatprep.subr.bf16.mxu0 0
      %1627 = vmatpush2.bf16.msra.mxu0 0
      %1628 = vmatprep.subr.bf16.mxu0 0
      %1629 = vmatpush2.bf16.msra.mxu0 0
      %1630 = vmatprep.subr.bf16.mxu0 0
      %1631 = vmatpush2.bf16.msra.mxu0 0
      %1632 = vmatprep.subr.bf16.mxu0 0
      %1633 = vmatpush2.bf16.msra.mxu0 0
      %1634 = vmatprep.mubr.bf16.mxu0 0
      %1635 = vmatmul.mubr.bf16.gmra.mxu0 %v1582
      %v1636 = vpop.f32.mrf.mxu0
      %v1637 = vadd.f32 0.0, %v1636
      %v1638 = vpop.f32.mrf.mxu0
      %v1639 = vpop.f32.mrf.mxu0
      %v1640 = vadd.f32 0.0, %v1639
      %v1641 = vpop.f32.mrf.mxu0
      %1642 = vmatprep.mubr.bf16.mxu0 0
      %1643 = vmatmul.mubr.bf16.gmra.mxu0 %v1585
      %v1644 = vpop.f32.mrf.mxu0
      %v1645 = vadd.f32 0.0, %v1644
      %v1646 = vpop.f32.mrf.mxu0
      %v1647 = vpop.f32.mrf.mxu0
      %v1648 = vadd.f32 0.0, %v1647
      %v1649 = vpop.f32.mrf.mxu0
      %1650 = vmatprep.mubr.bf16.mxu0 0
      %1651 = vmatmul.mubr.bf16.gmra.mxu0 %v1588
      %v1652 = vpop.f32.mrf.mxu0
      %v1653 = vadd.f32 0.0, %v1652
      %v1654 = vpop.f32.mrf.mxu0
      %v1655 = vpop.f32.mrf.mxu0
      %v1656 = vadd.f32 0.0, %v1655
      %v1657 = vpop.f32.mrf.mxu0
      %1658 = vmatprep.mubr.bf16.mxu0 0
      %1659 = vmatmul.mubr.bf16.gmra.mxu0 %v1591
      %v1660 = vpop.f32.mrf.mxu0
      %v1661 = vadd.f32 0.0, %v1660
      %v1662 = vpop.f32.mrf.mxu0
      %v1663 = vpop.f32.mrf.mxu0
      %v1664 = vadd.f32 0.0, %v1663
      %v1665 = vpop.f32.mrf.mxu0
      %1666 = vmatprep.mubr.bf16.mxu0 0
      %1667 = vmatmul.mubr.bf16.gmra.mxu0 %v1594
      %v1668 = vpop.f32.mrf.mxu0
      %v1669 = vadd.f32 0.0, %v1668
      %v1670 = vpop.f32.mrf.mxu0
      %v1671 = vpop.f32.mrf.mxu0
      %v1672 = vadd.f32 0.0, %v1671
      %v1673 = vpop.f32.mrf.mxu0
      %1674 = vmatprep.mubr.bf16.mxu0 0
      %1675 = vmatmul.mubr.bf16.gmra.mxu0 %v1597
      %v1676 = vpop.f32.mrf.mxu0
      %v1677 = vadd.f32 0.0, %v1676
      %v1678 = vpop.f32.mrf.mxu0
      %v1679 = vpop.f32.mrf.mxu0
      %v1680 = vadd.f32 0.0, %v1679
      %v1681 = vpop.f32.mrf.mxu0
      %1682 = vdwg.mxu0
      %v1683 = vadd.f32 %v1544, %v1637
      %v1684 = vadd.f32 %v1545, %v1640
      %v1685 = vadd.f32 %v1546, %v1645
      %v1686 = vadd.f32 %v1547, %v1648
      %v1687 = vadd.f32 %v1548, %v1653
      %v1688 = vadd.f32 %v1549, %v1656
      %v1689 = vadd.f32 %v1550, %v1661
      %v1690 = vadd.f32 %v1551, %v1664
      %v1691 = vadd.f32 %v1552, %v1669
      %v1692 = vadd.f32 %v1553, %v1672
      %v1693 = vadd.f32 %v1554, %v1677
      %v1694 = vadd.f32 %v1555, %v1680
      %v1695 = vld [vmem:[%s2] sm:$0x1]
      %v1697 = vlaneseq
      %v1698 = vshrl.u32 %v1697, 7
      %v1699 = vsub.s32 0, %v1698
      %v1700 = vrot.slane %v1695, %v1699
      %v1702 = vadd.f32 %v1683, %v1700
      %v1703 = vadd.f32 %v1684, %v1700
      %v1704 = vadd.f32 %v1685, %v1700
      %v1705 = vadd.f32 %v1686, %v1700
      %v1706 = vadd.f32 %v1687, %v1700
      %v1707 = vadd.f32 %v1688, %v1700
      %v1708 = vadd.f32 %v1689, %v1700
      %v1709 = vadd.f32 %v1690, %v1700
      %v1710 = vadd.f32 %v1691, %v1700
      %v1711 = vadd.f32 %v1692, %v1700
      %v1712 = vadd.f32 %v1693, %v1700
      %v1713 = vadd.f32 %v1694, %v1700
      %vm1714 = vcmp.ge.f32.partialorder %v1702, 0.0
      %vm1715 = vcmp.ge.f32.partialorder %v1703, 0.0
      %vm1716 = vcmp.ge.f32.partialorder %v1704, 0.0
      %vm1717 = vcmp.ge.f32.partialorder %v1705, 0.0
      %vm1718 = vcmp.ge.f32.partialorder %v1706, 0.0
      %vm1719 = vcmp.ge.f32.partialorder %v1707, 0.0
      %vm1720 = vcmp.ge.f32.partialorder %v1708, 0.0
      %vm1721 = vcmp.ge.f32.partialorder %v1709, 0.0
      %vm1722 = vcmp.ge.f32.partialorder %v1710, 0.0
      %vm1723 = vcmp.ge.f32.partialorder %v1711, 0.0
      %vm1724 = vcmp.ge.f32.partialorder %v1712, 0.0
      %vm1725 = vcmp.ge.f32.partialorder %v1713, 0.0
      %v1726 = vmul.f32 %v1702, 0.1
      %v1727 = vmul.f32 %v1703, 0.1
      %v1728 = vmul.f32 %v1704, 0.1
      %v1729 = vmul.f32 %v1705, 0.1
      %v1730 = vmul.f32 %v1706, 0.1
      %v1731 = vmul.f32 %v1707, 0.1
      %v1732 = vmul.f32 %v1708, 0.1
      %v1733 = vmul.f32 %v1709, 0.1
      %v1734 = vmul.f32 %v1710, 0.1
      %v1735 = vmul.f32 %v1711, 0.1
      %v1736 = vmul.f32 %v1712, 0.1
      %v1737 = vmul.f32 %v1713, 0.1
      %v1738 = vsel %vm1714, %v1702, %v1726
      %v1739 = vsel %vm1715, %v1703, %v1727
      %v1740 = vsel %vm1716, %v1704, %v1728
      %v1741 = vsel %vm1717, %v1705, %v1729
      %v1742 = vsel %vm1718, %v1706, %v1730
      %v1743 = vsel %vm1719, %v1707, %v1731
      %v1744 = vsel %vm1720, %v1708, %v1732
      %v1745 = vsel %vm1721, %v1709, %v1733
      %v1746 = vsel %vm1722, %v1710, %v1734
      %v1747 = vsel %vm1723, %v1711, %v1735
      %v1748 = vsel %vm1724, %v1712, %v1736
      %v1749 = vsel %vm1725, %v1713, %v1737
      %vm1750 = vcmask 195584
      %1751 = vst.msk [vmem:[%s192] sm:$0xff] %vm1750, %v1738
      %1752 = vst.msk [vmem:[%s192 + $0x8] sm:$0xff] %vm1750, %v1739
      %1753 = vst.msk [vmem:[%s192 + $0x10] sm:$0xff] %vm1750, %v1740
      %1754 = vst.msk [vmem:[%s192 + $0x18] sm:$0xff] %vm1750, %v1741
      %1755 = vst.msk [vmem:[%s192 + $0x20] sm:$0xff] %vm1750, %v1742
      %1756 = vst.msk [vmem:[%s192 + $0x28] sm:$0xff] %vm1750, %v1743
      %1757 = vst.msk [vmem:[%s192 + $0x30] sm:$0xff] %vm1750, %v1744
      %1758 = vst.msk [vmem:[%s192 + $0x38] sm:$0xff] %vm1750, %v1745
      %1759 = vst.msk [vmem:[%s192 + $0x40] sm:$0xff] %vm1750, %v1746
      %1760 = vst.msk [vmem:[%s192 + $0x48] sm:$0xff] %vm1750, %v1747
      %1761 = vst.msk [vmem:[%s192 + $0x50] sm:$0xff] %vm1750, %v1748
      %1762 = vst.msk [vmem:[%s192 + $0x58] sm:$0xff] %vm1750, %v1749
      %s1763 = smul.u32 12, %s19
      %p1764 = scmp.lt.s32.totalorder %s18, 1
      %s1765 = scalar_select %p1764, %s18, 1
      %p1766 = scmp.lt.s32.totalorder %s1763, 11
      %s1767 = scalar_select %p1766, %s1763, 11
      %s1768 = smul.addr %s1765, 12
      %s1769 = sadd.s32 %s1767, %s1768
      %s1770 = smul.addr %s1769, 8
      %s1771 = scalar_lea.vmem %s3, %s1770
      // Predicated region
      $region33: #{tpu_custom_call.1} parent=31 // pred_check
        %p1772 = pneg %p114
      $region34: #{tpu_custom_call.1} parent=31 // pred_check_branch
        %1774 = sbr.rel (%p1772) target = $region36
      $region35: #{tpu_custom_call.1} parent=31 // pred_region
        %s1775 = smul.u32 12, %s19
      $region36: #{tpu_custom_call.1} parent=31 // pred_fallthru
        _
    $region32: #{tpu_custom_call.1} parent=5 // pred_fallthru
      _
    %p1776 = scmp.le.s32.totalorder 2, %s9
    // Predicated region
    $region37: #{tpu_custom_call.1} parent=5 // pred_check
      %p1777 = pneg %p1776
    $region38: #{tpu_custom_call.1} parent=5 // pred_check_branch
      %1779 = sbr.rel (%p1777) target = $region40
    $region39: #{tpu_custom_call.1} parent=5 // pred_region
      %s1780 = ssub.s32 %s9, 2
      // Predicated region
      $region41: #{tpu_custom_call.1} parent=39 // pred_check
        %p1781 = pneg %p120
      $region42: #{tpu_custom_call.1} parent=39 // pred_check_branch
        %1783 = sbr.rel (%p1781) target = $region44
      $region43: #{tpu_custom_call.1} parent=39 // pred_region
        %s1784 = smul.u32 12, %s21
        %p1785 = scmp.lt.s32.totalorder %s20, 1
        %s1786 = scalar_select %p1785, %s20, 1
        %p1787 = scmp.lt.s32.totalorder %s1784, 11
        %s1788 = scalar_select %p1787, %s1784, 11
        %s1789 = smul.addr %s1786, 12
        %s1790 = sadd.s32 %s1788, %s1789
        %s1791 = smul.addr %s1790, 8
        %s1792 = scalar_lea.vmem %s3, %s1791
      $region44: #{tpu_custom_call.1} parent=39 // pred_fallthru
        _
    $region40: #{tpu_custom_call.1} parent=5 // pred_fallthru
      _
  $region6: #{tpu_custom_call.1} parent=0 // loop_footer
    %s13 = sadd.s32 1, %s9
  $region7: #{tpu_custom_call.1} parent=0 // loop_footer_branch
    %8 = sbr.rel target = $region3
  $region8: #{tpu_custom_call.1} parent=0 // loop_exit
    _

</llo_original>
